<compile_context>
chip_gen: v7x
topology: tpu7x:2x2x1
jax: 0.10.0
libtpu: 0.0.40
codegen_flags: <defaults>
</compile_context>

<pallas_src>
import functools

import jax
import jax.numpy as jnp
from jax import lax
from jax.experimental import pallas as pl
from jax.experimental.pallas import tpu as pltpu

NUM_EMBED = 64                 # num_embed in the PyTorch module
SEQ_LEN = 32                   # seq_len in the PyTorch module (tril buffer size)
NEG_INF = -1e30                # large finite negative for the causal mask
VMEM_LIMIT_BYTES = 48 * 1024 * 1024   # explicit scoped-VMEM budget (safe on v5e/v6e/v7x)


def head_attention_kernel(x_ref, w_ref, o_ref, *, seq_len, lane_dense_out):
    """One grid step == one block of BB batch elements.

    x_ref: (BB*T, C)   flattened batch block of the input (native dtype; cast in-kernel)
    w_ref: (C, 3H)     fused [K | Q*scale | V] projection weights (bf16)
    o_ref: (BB, T*H)   lane-dense output block   (or (BB*T, H) fallback layout)
    """
    T = seq_len
    BT, C = x_ref.shape
    BB = BT // T
    H = w_ref.shape[1] // 3

    # Cast to bf16 in-kernel (VPU slot has slack in this mem-bound kernel);
    # avoids a separate XLA convert pass over x in HBM.
    x = x_ref[...].astype(jnp.bfloat16)

    # Single tall fused QKV projection on the MXU, f32 accumulation.
    qkv = jnp.dot(x, w_ref[...], preferred_element_type=jnp.float32)   # (BB*T, 3H)
    k = qkv[:, 0 * H:1 * H].reshape(BB, T, H)
    q = qkv[:, 1 * H:2 * H].reshape(BB, T, H)   # 1/sqrt(C) already folded into W_q
    v = qkv[:, 2 * H:3 * H].reshape(BB, T, H)

    # Scores q @ k^T per batch element; contract last dims (no explicit transpose).
    s = jnp.einsum('bqh,bkh->bqk',
                   q.astype(jnp.bfloat16), k.astype(jnp.bfloat16),
                   preferred_element_type=jnp.float32)                 # (BB, T, T)

    # Causal (tril) mask.
    row = lax.broadcasted_iota(jnp.int32, s.shape, 1)
    col = lax.broadcasted_iota(jnp.int32, s.shape, 2)
    s = jnp.where(col <= row, s, jnp.float32(NEG_INF))

    # Numerically stable softmax in f32; reciprocal rides the EUP slot.
    s = s - jnp.max(s, axis=-1, keepdims=True)
    p = jnp.exp(s)
    p = p * pl.reciprocal(jnp.sum(p, axis=-1, keepdims=True), approx=True)

    # Dropout on attention weights: identity in eval mode.

    # Weighted sum of values (batched matmul, f32 accumulation).
    out = jnp.einsum('bqk,bkh->bqh',
                     p.astype(jnp.bfloat16), v.astype(jnp.bfloat16),
                     preferred_element_type=jnp.float32)               # (BB, T, H)

    if lane_dense_out:
        # Lane-dense store: (BB, T*H) is 512 lanes wide -> unmasked vst.
        o_ref[...] = out.reshape(BB, T * H).astype(o_ref.dtype)
    else:
        o_ref[...] = out.reshape(BT, H).astype(o_ref.dtype)


def prepare_qkv_weight(w_key, w_query, w_value, num_channels,
                       dtype=jnp.bfloat16):
    """Fuse the three (H, C) nn.Linear weights into one (C, 3H) matrix.

    The 1/sqrt(C) attention scale is folded into the query weight. Done once
    outside the hot path (weights are static).
    """
    scale = float(num_channels) ** -0.5
    w_qkv = jnp.concatenate([w_key.T, (w_query * scale).T, w_value.T], axis=1)
    return w_qkv.astype(dtype)


def _pick_batch_block(batch, max_block=256):
    """Pick a batch block BB.

    Preferences (in order): divisor of batch; keeps the grid >= 2 when
    batch >= 2 (so v7x's two TensorCores both get work); multiple of 8 so the
    lane-dense (BB, T*H) output block is sublane-aligned; as large as possible
    up to max_block (mem-bound kernel -> bigger resident blocks -> closer to
    the HBM roofline).
    """
    if batch < 2:
        return batch
    cap = max(1, min(max_block, batch // 2))
    best_any = None
    for bb in range(cap, 0, -1):
        if batch % bb == 0:
            if bb % 8 == 0:
                return bb
            if best_any is None:
                best_any = bb
    return best_any


def head_attention(x, w_qkv, *, block_b=None, out_dtype=None):
    """x: (B, T, C); w_qkv: (C, 3H) from prepare_qkv_weight. Returns (B, T, H).

    out_dtype=jnp.bfloat16 halves output HBM traffic; default keeps x.dtype.
    """
    B, T, C = x.shape
    H = w_qkv.shape[1] // 3
    BB = _pick_batch_block(B) if block_b is None else block_b
    assert B % BB == 0, "batch must be divisible by the batch block"
    out_dtype = x.dtype if out_dtype is None else out_dtype

    # No dtype convert here: reshape is a free contiguous view; the bf16 cast
    # happens in-kernel right before the QKV matmul.
    x2d = x.reshape(B * T, C)
    w_qkv = w_qkv.astype(jnp.bfloat16)

    # Lane-dense (BB, T*H) output whenever its block is legal (BB multiple of 8
    # or the full batch); otherwise fall back to the (B*T, H) layout.
    lane_dense = (BB % 8 == 0) or (BB == B)
    if lane_dense:
        out_shape = jax.ShapeDtypeStruct((B, T * H), out_dtype)
        out_spec = pl.BlockSpec((BB, T * H), lambda b: (b, 0))
    else:
        out_shape = jax.ShapeDtypeStruct((B * T, H), out_dtype)
        out_spec = pl.BlockSpec((BB * T, H), lambda b: (b, 0))

    kernel = functools.partial(head_attention_kernel, seq_len=T,
                               lane_dense_out=lane_dense)

    out2d = pl.pallas_call(
        kernel,
        out_shape=out_shape,
        grid_spec=pltpu.PrefetchScalarGridSpec(
            num_scalar_prefetch=0,
            grid=(B // BB,),
            in_specs=[
                pl.BlockSpec((BB * T, C), lambda b: (b, 0)),
                pl.BlockSpec((C, 3 * H), lambda b: (0, 0)),
            ],
            out_specs=out_spec,
        ),
        compiler_params=pltpu.CompilerParams(
            dimension_semantics=("parallel",),   # batch blocks split across TCs (v7x)
            vmem_limit_bytes=VMEM_LIMIT_BYTES),
    )(x2d, w_qkv)
    return out2d.reshape(B, T, H)


def head_attention_ref(x, w_key, w_query, w_value):
    """Plain-JAX reference mirroring the PyTorch forward (eval mode, f32)."""
    B, T, C = x.shape
    k = x @ w_key.T
    q = x @ w_query.T
    v = x @ w_value.T
    w = (q @ jnp.swapaxes(k, -2, -1)) * (C ** -0.5)
    tril = jnp.tril(jnp.ones((SEQ_LEN, SEQ_LEN)))[:T, :T]
    w = jnp.where(tril == 0, -jnp.inf, w)
    w = jax.nn.softmax(w, axis=-1)
    return w @ v


if __name__ == "__main__":
    key = jax.random.PRNGKey(0)
    kx, kk, kq, kv = jax.random.split(key, 4)

    B = 16               # batch (keeps grid >= 2 and BB a multiple of 8)
    T = SEQ_LEN          # current sequence length (<= seq_len buffer)
    C = NUM_EMBED        # 64
    H = 16               # size_head

    x = jax.random.normal(kx, (B, T, C), dtype=jnp.float32)
    # nn.Linear(num_embed, size_head, bias=False) weights: shape (H, C)
    w_key = jax.random.normal(kk, (H, C), dtype=jnp.float32) * (C ** -0.5)
    w_query = jax.random.normal(kq, (H, C), dtype=jnp.float32) * (C ** -0.5)
    w_value = jax.random.normal(kv, (H, C), dtype=jnp.float32) * (C ** -0.5)

    # One-time weight fusion (outside the hot path).
    w_qkv = prepare_qkv_weight(w_key, w_query, w_value, C)

    out = head_attention(x, w_qkv)
    out = jax.block_until_ready(out)

    ref = head_attention_ref(x, w_key, w_query, w_value)
    assert out.shape == (B, T, H)
    # bf16 matmul operands (f32 accumulation) => compare at bf16-level tolerance.
    assert jnp.allclose(out, ref, atol=5e-2, rtol=5e-2), "mismatch vs reference"

    print("KERNEL_OK")
</pallas_src>

<mosaic_0001>
module attributes {stable_mosaic.version = 11 : i64} {
  func.func @head_attention_kernel(%arg0: i32, %arg1: memref<256x64xf32, #tpu.memory_space<vmem>>, %arg2: memref<64x48xbf16, #tpu.memory_space<vmem>>, %arg3: memref<8x512xf32, #tpu.memory_space<vmem>>) attributes {dimension_semantics = [#tpu.dimension_semantics<parallel>], iteration_bounds = array<i64: 2>, scalar_prefetch = 0 : i64, scratch_operands = 0 : i64, tpu.core_type = #tpu.core_type<tc>, window_params = [{transform_indices = @transform_0, window_bounds = array<i64: 256, 64>}, {pipeline_mode = #tpu.pipeline_mode<synchronous>, transform_indices = @transform_1, window_bounds = array<i64: 64, 48>}, {transform_indices = @transform_2, window_bounds = array<i64: 8, 512>}]} {
    %c0 = arith.constant 0 : index
    %c0_0 = arith.constant 0 : index
    %0 = vector.load %arg1[%c0, %c0_0] : memref<256x64xf32, #tpu.memory_space<vmem>>, vector<256x64xf32>
    %1 = arith.truncf %0 : vector<256x64xf32> to vector<256x64xbf16>
    %c0_1 = arith.constant 0 : index
    %c0_2 = arith.constant 0 : index
    %2 = vector.load %arg2[%c0_1, %c0_2] : memref<64x48xbf16, #tpu.memory_space<vmem>>, vector<64x48xbf16>
    %cst = arith.constant dense<0.000000e+00> : vector<256x48xf32>
    %3 = tpu.matmul %1, %2, %cst {dimension_numbers = #tpu.dot_dimension_numbers<[1], [0], [0], [1], [0, 0, 1, 1], [], []>} : vector<256x64xbf16>, vector<64x48xbf16>, vector<256x48xf32> -> vector<256x48xf32>
    %4 = vector.extract_strided_slice %3 {offsets = [0, 0], sizes = [256, 16], strides = [1, 1]} : vector<256x48xf32> to vector<256x16xf32>
    %5 = vector.shape_cast %4 : vector<256x16xf32> to vector<8x32x16xf32>
    %6 = vector.extract_strided_slice %3 {offsets = [0, 16], sizes = [256, 16], strides = [1, 1]} : vector<256x48xf32> to vector<256x16xf32>
    %7 = vector.shape_cast %6 : vector<256x16xf32> to vector<8x32x16xf32>
    %8 = vector.extract_strided_slice %3 {offsets = [0, 32], sizes = [256, 16], strides = [1, 1]} : vector<256x48xf32> to vector<256x16xf32>
    %9 = vector.shape_cast %8 : vector<256x16xf32> to vector<8x32x16xf32>
    %10 = arith.truncf %7 : vector<8x32x16xf32> to vector<8x32x16xbf16>
    %11 = arith.truncf %5 : vector<8x32x16xf32> to vector<8x32x16xbf16>
    "tpu.trace_start"() <{level = 10 : i32, message = "bqh,bkh->bqk"}> : () -> ()
    %cst_3 = arith.constant dense<0.000000e+00> : vector<8x32x32xf32>
    %12 = tpu.matmul %10, %11, %cst_3 {dimension_numbers = #tpu.dot_dimension_numbers<[2], [2], [1], [1], [0, 0, 0, 1, 1, 1], [0], [0]>} : vector<8x32x16xbf16>, vector<8x32x16xbf16>, vector<8x32x32xf32> -> vector<8x32x32xf32>
    "tpu.trace_stop"() : () -> ()
    %13 = tpu.iota {dimensions = array<i32: 1>} : vector<8x32x32xi32>
    %14 = tpu.iota {dimensions = array<i32: 2>} : vector<8x32x32xi32>
    %15 = arith.cmpi sle, %14, %13 : vector<8x32x32xi32>
    %cst_4 = arith.constant -1.000000e+30 : f32
    %16 = vector.broadcast %cst_4 : f32 to vector<8x32x32xf32>
    %17 = arith.select %15, %12, %16 : vector<8x32x32xi1>, vector<8x32x32xf32>
    %cst_5 = arith.constant dense<0xFF800000> : vector<8x32xf32>
    %18 = vector.multi_reduction <maximumf>, %17, %cst_5 [2] : vector<8x32x32xf32> to vector<8x32xf32>
    %19 = vector.shape_cast %18 : vector<8x32xf32> to vector<8x32x1xf32>
    %20 = vector.broadcast %19 : vector<8x32x1xf32> to vector<8x32x32xf32>
    %21 = arith.subf %17, %20 : vector<8x32x32xf32>
    %22 = math.exp %21 : vector<8x32x32xf32>
    %cst_6 = arith.constant dense<0.000000e+00> : vector<8x32xf32>
    %23 = vector.multi_reduction <add>, %22, %cst_6 [2] : vector<8x32x32xf32> to vector<8x32xf32>
    %24 = vector.shape_cast %23 : vector<8x32xf32> to vector<8x32x1xf32>
    %25 = tpu.reciprocal %24 {approx = true} : vector<8x32x1xf32> -> vector<8x32x1xf32>
    %26 = vector.broadcast %25 : vector<8x32x1xf32> to vector<8x32x32xf32>
    %27 = arith.mulf %22, %26 : vector<8x32x32xf32>
    %28 = arith.truncf %27 : vector<8x32x32xf32> to vector<8x32x32xbf16>
    %29 = arith.truncf %9 : vector<8x32x16xf32> to vector<8x32x16xbf16>
    "tpu.trace_start"() <{level = 10 : i32, message = "bqk,bkh->bqh"}> : () -> ()
    %cst_7 = arith.constant dense<0.000000e+00> : vector<8x32x16xf32>
    %30 = tpu.matmul %28, %29, %cst_7 {dimension_numbers = #tpu.dot_dimension_numbers<[2], [1], [1], [2], [0, 0, 0, 1, 1, 2], [0], [0]>} : vector<8x32x32xbf16>, vector<8x32x16xbf16>, vector<8x32x16xf32> -> vector<8x32x16xf32>
    "tpu.trace_stop"() : () -> ()
    %31 = vector.shape_cast %30 : vector<8x32x16xf32> to vector<8x512xf32>
    %c0_8 = arith.constant 0 : index
    %c0_9 = arith.constant 0 : index
    %32 = vector.load %arg3[%c0_8, %c0_9] : memref<8x512xf32, #tpu.memory_space<vmem>>, vector<8x512xf32>
    tpu.vector_store %arg3[%c0_8, %c0_9], %31 {strides = array<i32>} : memref<8x512xf32, #tpu.memory_space<vmem>>, vector<8x512xf32>,
    return
  }
  func.func @transform_0(%arg0: i32) -> (i32, i32) {
    %c0_i32 = arith.constant 0 : i32
    %c0_i32_0 = arith.constant 0 : i32
    return %arg0, %c0_i32 : i32, i32
  }
  func.func @transform_1(%arg0: i32) -> (i32, i32) {
    %c0_i32 = arith.constant 0 : i32
    %c0_i32_0 = arith.constant 0 : i32
    %c0_i32_1 = arith.constant 0 : i32
    return %c0_i32, %c0_i32_0 : i32, i32
  }
  func.func @transform_2(%arg0: i32) -> (i32, i32) {
    %c0_i32 = arith.constant 0 : i32
    %c0_i32_0 = arith.constant 0 : i32
    return %arg0, %c0_i32 : i32, i32
  }
}

</mosaic_0001>

<llo_original>
// kernel: tpu_custom_call.1
$region0: #{tpu_custom_call.1}
  #allocation0 [shape = 'u32[]', space=smem, size = 0x4, offset = 0x4, fixed_abs, tag = 'smem constant byte address 0x4 - core index']
  #allocation1 [shape = 'u32[144,128]{1,0:T(1,128)}', space=vmem, size = 0x12000, scoped, tag = 'internal scratch']
  %s0 = inlined_call_operand.vmem [shape: f32[512,64], index: 0, kind: input, shape index: {}]
  %s1 = inlined_call_operand.vmem [shape: bf16[64,48], index: 1, kind: input, shape index: {}]
  %s2 = inlined_call_operand.hbm [shape: f32[16,512], index: 2, kind: output, shape index: {}]
  %s3 = sld [smem:[#allocation0]]
  $region41: #{tpu_custom_call.1} parent=0
    _
  %s5 = ssub.s32 1, %s3
  %s6 = scalar_select 0, %s5, %s3
  $region1: #{tpu_custom_call.1} parent=0
    #allocation2 [shape = 'u8[32768]{0}', space=vmem, size = 0x8000, scoped, tag = 'output window, operand 0']
    #allocation3 [shape = 's32[2]{0}', space=sflag, size = 0x8, scoped, tag = 'scoped memory for tpu_custom_call.1']
    %7 = vsyncpa [#allocation3], 0
    %s8 = scalar_lea.sflag [#allocation3], 1
    %9 = vsyncpa %s8, 0
    loop: start=0, step=1, limit=4
    $region2: #{tpu_custom_call.1} parent=1 // loop_pre_header
      _
    $region3: #{tpu_custom_call.1} parent=1 // loop_header
      %s11 = sphi 0, %s15
      %p12 = scmp.ge.s32.totalorder %s11, 4
      %s21 = sphi 0, %s23
      %s24 = sphi 0, %s21
      %s25 = sphi 0, %s24
      %s41 = sphi 0, %s25
      %s45 = sphi 0, %s45
      %s47 = sphi 0, %s45
      %s48 = sphi 0, %s47
      %s62 = sphi 0, %s48
      %s68 = sphi 0, %s70
      %s71 = sphi 0, %s68
      %s72 = sphi 0, %s71
      %s88 = sphi 0, %s72
    $region4: #{tpu_custom_call.1} parent=1 // loop_header_branch
      %14 = sbr.rel (%p12) target = $region8
    $region5: #{tpu_custom_call.1} parent=1 // loop_body
      %s16 = ssub.s32 %s11, 1
      %s17 = ssub.s32 %s11, 2
      %s18 = sadd.s32 %s11, 1
      %s19 = ssub.s32 %s11, %s18
      %p20 = scmp.eq.s32.totalorder %s19, 0
      %s22 = sadd.s32 %s21, 1
      %s23 = scalar_select %p20, %s21, %s22
      %p26 = pneg %p20
      %p27 = scmp.eq.s32.totalorder %s11, 1
      %p28 = por %p26, %p27
      %p29 = scmp.ne.s32.totalorder %s21, %s24
      %p30 = scmp.eq.s32.totalorder %s11, 0
      %p31 = por %p29, %p30
      %p32 = scmp.ne.s32.totalorder %s21, %s24
      %p33 = scmp.eq.s32.totalorder %s16, 1
      %p34 = por %p32, %p33
      %p35 = scmp.ne.s32.totalorder %s24, %s25
      %p36 = scmp.eq.s32.totalorder %s16, 0
      %p37 = por %p35, %p36
      %p38 = scmp.ne.s32.totalorder %s24, %s25
      %p39 = scmp.eq.s32.totalorder %s17, 1
      %p40 = por %p38, %p39
      %p42 = scmp.ne.s32.totalorder %s25, %s41
      %p43 = scmp.eq.s32.totalorder %s17, 0
      %p44 = por %p42, %p43
      %s46 = sadd.s32 %s45, 1
      %p49 = scmp.eq.s32.totalorder %s11, 1
      %p50 = scmp.ne.s32.totalorder %s45, %s47
      %p51 = scmp.eq.s32.totalorder %s11, 0
      %p52 = por %p50, %p51
      %p53 = scmp.ne.s32.totalorder %s45, %s47
      %p54 = scmp.eq.s32.totalorder %s16, 1
      %p55 = por %p53, %p54
      %p56 = scmp.ne.s32.totalorder %s47, %s48
      %p57 = scmp.eq.s32.totalorder %s16, 0
      %p58 = por %p56, %p57
      %p59 = scmp.ne.s32.totalorder %s47, %s48
      %p60 = scmp.eq.s32.totalorder %s17, 1
      %p61 = por %p59, %p60
      %p63 = scmp.ne.s32.totalorder %s48, %s62
      %p64 = scmp.eq.s32.totalorder %s17, 0
      %p65 = por %p63, %p64
      %s66 = ssub.s32 %s11, %s18
      %p67 = scmp.eq.s32.totalorder %s66, 0
      %s69 = sadd.s32 %s68, 1
      %s70 = scalar_select %p67, %s68, %s69
      %p73 = pneg %p67
      %p74 = scmp.eq.s32.totalorder %s11, 1
      %p75 = por %p73, %p74
      %p76 = scmp.ne.s32.totalorder %s68, %s71
      %p77 = scmp.eq.s32.totalorder %s11, 0
      %p78 = por %p76, %p77
      %p79 = scmp.ne.s32.totalorder %s68, %s71
      %p80 = scmp.eq.s32.totalorder %s16, 1
      %p81 = por %p79, %p80
      %p82 = scmp.ne.s32.totalorder %s71, %s72
      %p83 = scmp.eq.s32.totalorder %s16, 0
      %p84 = por %p82, %p83
      %p85 = scmp.ne.s32.totalorder %s71, %s72
      %p86 = scmp.eq.s32.totalorder %s17, 1
      %p87 = por %p85, %p86
      %p89 = scmp.ne.s32.totalorder %s72, %s88
      %p90 = scmp.eq.s32.totalorder %s17, 0
      %p91 = por %p89, %p90
      %p92 = scmp.le.s32.totalorder 1, %s11
      %p93 = scmp.lt.s32.totalorder %s11, 3
      %p94 = pnand %p92, %p93
      %p95 = pneg %p94
      // Predicated region
      $region9: #{tpu_custom_call.1} parent=5 // pred_check
        _
      $region10: #{tpu_custom_call.1} parent=5 // pred_check_branch
        %97 = sbr.rel (%p94) target = $region12
      $region11: #{tpu_custom_call.1} parent=5 // pred_region
        %s98 = ssub.s32 %s11, 1
        // Predicated region
        $region13: #{tpu_custom_call.1} parent=11 // pred_check
          %p99 = pneg %p58
        $region14: #{tpu_custom_call.1} parent=11 // pred_check_branch
          %101 = sbr.rel (%p99) target = $region16
        $region15: #{tpu_custom_call.1} parent=11 // pred_region
          _
        $region16: #{tpu_custom_call.1} parent=11 // pred_fallthru
          _
      $region12: #{tpu_custom_call.1} parent=5 // pred_fallthru
        _
      %p102 = scmp.lt.s32.totalorder %s11, 2
      // Predicated region
      $region17: #{tpu_custom_call.1} parent=5 // pred_check
        %p103 = pneg %p102
      $region18: #{tpu_custom_call.1} parent=5 // pred_check_branch
        %105 = sbr.rel (%p103) target = $region20
      $region19: #{tpu_custom_call.1} parent=5 // pred_region
        // Predicated region
        $region21: #{tpu_custom_call.1} parent=19 // pred_check
          %p106 = pneg %p31
        $region22: #{tpu_custom_call.1} parent=19 // pred_check_branch
          %108 = sbr.rel (%p106) target = $region24
        $region23: #{tpu_custom_call.1} parent=19 // pred_region
          %s109 = smul.u32 32, %s11
          %p110 = scmp.lt.s32.totalorder %s109, 63
          %s111 = scalar_select %p110, %s109, 63
          %s112 = smul.addr %s111, 8
          %s113 = scalar_lea.vmem %s0, %s112
          %s114 = smul.u32 32, %s11
        $region24: #{tpu_custom_call.1} parent=19 // pred_fallthru
          _
      $region20: #{tpu_custom_call.1} parent=5 // pred_fallthru
        _
      %p115 = scmp.le.s32.totalorder 1, %s11
      %p116 = scmp.lt.s32.totalorder %s11, 3
      %p117 = pnand %p115, %p116
      %p118 = pneg %p117
      // Predicated region
      $region25: #{tpu_custom_call.1} parent=5 // pred_check
        _
      $region26: #{tpu_custom_call.1} parent=5 // pred_check_branch
        %120 = sbr.rel (%p117) target = $region28
      $region27: #{tpu_custom_call.1} parent=5 // pred_region
        %s121 = ssub.s32 %s11, 1
        %s122 = smul.u32 32, %s16
        %p123 = scmp.lt.s32.totalorder %s122, 63
        %s124 = scalar_select %p123, %s122, 63
        %s125 = smul.addr %s124, 8
        %s126 = scalar_lea.vmem %s0, %s125
        %p127 = pneg %p37
        %p128 = pneg %p34
        %p129 = pneg %p58
        %p130 = pneg %p55
        %p131 = pneg %p84
        %p132 = pneg %p81
        %s133 = sand.u32 %s71, 1
        %s134 = scalar_lea.sflag [#allocation3], %s133
        %s135 = sand.u32 %s71, 1
        %s136 = smul.addr %s135, 32
        %s137 = scalar_lea.vmem [#allocation2], %s136
        %s138 = smul.u32 32, %s16
        %p139 = scmp.lt.s32.totalorder %s138, 63
        %s140 = scalar_select %p139, %s138, 63
        %s141 = smul.addr %s140, 8
        %s142 = scalar_lea.vmem %s0, %s141
        %s143 = smul.u32 32, %s16
        %v145 = vld [vmem:[%s142] sm:$0xff]
        %v146 = vld [vmem:[%s142 + $0x8] sm:$0xff]
        %v147 = vld [vmem:[%s142 + $0x10] sm:$0xff]
        %v148 = vld [vmem:[%s142 + $0x18] sm:$0xff]
        %v149 = vld [vmem:[%s142 + $0x20] sm:$0xff]
        %v150 = vld [vmem:[%s142 + $0x28] sm:$0xff]
        %v151 = vld [vmem:[%s142 + $0x30] sm:$0xff]
        %v152 = vld [vmem:[%s142 + $0x38] sm:$0xff]
        %v153 = vld [vmem:[%s142 + $0x40] sm:$0xff]
        %v154 = vld [vmem:[%s142 + $0x48] sm:$0xff]
        %v155 = vld [vmem:[%s142 + $0x50] sm:$0xff]
        %v156 = vld [vmem:[%s142 + $0x58] sm:$0xff]
        %v157 = vld [vmem:[%s142 + $0x60] sm:$0xff]
        %v158 = vld [vmem:[%s142 + $0x68] sm:$0xff]
        %v159 = vld [vmem:[%s142 + $0x70] sm:$0xff]
        %v160 = vld [vmem:[%s142 + $0x78] sm:$0xff]
        %v161 = vld [vmem:[%s142 + $0x80] sm:$0xff]
        %v162 = vld [vmem:[%s142 + $0x88] sm:$0xff]
        %v163 = vld [vmem:[%s142 + $0x90] sm:$0xff]
        %v164 = vld [vmem:[%s142 + $0x98] sm:$0xff]
        %v165 = vld [vmem:[%s142 + $0xa0] sm:$0xff]
        %v166 = vld [vmem:[%s142 + $0xa8] sm:$0xff]
        %v167 = vld [vmem:[%s142 + $0xb0] sm:$0xff]
        %v168 = vld [vmem:[%s142 + $0xb8] sm:$0xff]
        %v169 = vld [vmem:[%s142 + $0xc0] sm:$0xff]
        %v170 = vld [vmem:[%s142 + $0xc8] sm:$0xff]
        %v171 = vld [vmem:[%s142 + $0xd0] sm:$0xff]
        %v172 = vld [vmem:[%s142 + $0xd8] sm:$0xff]
        %v173 = vld [vmem:[%s142 + $0xe0] sm:$0xff]
        %v174 = vld [vmem:[%s142 + $0xe8] sm:$0xff]
        %v175 = vld [vmem:[%s142 + $0xf0] sm:$0xff]
        %v176 = vld [vmem:[%s142 + $0xf8] sm:$0xff]
        %v177 = vpack.c.bf16 %v146, %v145
        %v178 = vpack.c.bf16 %v148, %v147
        %v179 = vpack.c.bf16 %v150, %v149
        %v180 = vpack.c.bf16 %v152, %v151
        %v181 = vpack.c.bf16 %v154, %v153
        %v182 = vpack.c.bf16 %v156, %v155
        %v183 = vpack.c.bf16 %v158, %v157
        %v184 = vpack.c.bf16 %v160, %v159
        %v185 = vpack.c.bf16 %v162, %v161
        %v186 = vpack.c.bf16 %v164, %v163
        %v187 = vpack.c.bf16 %v166, %v165
        %v188 = vpack.c.bf16 %v168, %v167
        %v189 = vpack.c.bf16 %v170, %v169
        %v190 = vpack.c.bf16 %v172, %v171
        %v191 = vpack.c.bf16 %v174, %v173
        %v192 = vpack.c.bf16 %v176, %v175
        %v193 = vld [vmem:[%s1] sm:$0xf]
        %v194 = vld [vmem:[%s1 + $0x4] sm:$0xf]
        %v195 = vld [vmem:[%s1 + $0x8] sm:$0xf]
        %v196 = vld [vmem:[%s1 + $0xc] sm:$0xf]
        %v197 = vld [vmem:[%s1 + $0x10] sm:$0xf]
        %v198 = vld [vmem:[%s1 + $0x14] sm:$0xf]
        %v199 = vld [vmem:[%s1 + $0x18] sm:$0xf]
        %v200 = vld [vmem:[%s1 + $0x1c] sm:$0xf]
        %v209 = vunpack.c.l.b16 %v193
        %v210 = vunpack.c.l.b16 %v194
        %v211 = vunpack.c.l.b16 %v195
        %v212 = vunpack.c.l.b16 %v196
        %v213 = vunpack.c.l.b16 %v197
        %v214 = vunpack.c.l.b16 %v198
        %v215 = vunpack.c.l.b16 %v199
        %v216 = vunpack.c.l.b16 %v200
        %v217 = vpack.c.b16 %v210, %v209
        %v218 = vpack.c.b16 %v212, %v211
        %v219 = vpack.c.b16 %v214, %v213
        %v220 = vpack.c.b16 %v216, %v215
        %vm225 = vcmask 523264
        %v227 = vsel %vm225, %v177, 0
        %v230 = vsel %vm225, %v178, 0
        %v233 = vsel %vm225, %v179, 0
        %v236 = vsel %vm225, %v180, 0
        %v239 = vsel %vm225, %v181, 0
        %v242 = vsel %vm225, %v182, 0
        %v245 = vsel %vm225, %v183, 0
        %v248 = vsel %vm225, %v184, 0
        %v251 = vsel %vm225, %v185, 0
        %v254 = vsel %vm225, %v186, 0
        %v257 = vsel %vm225, %v187, 0
        %v260 = vsel %vm225, %v188, 0
        %v263 = vsel %vm225, %v189, 0
        %v266 = vsel %vm225, %v190, 0
        %v269 = vsel %vm225, %v191, 0
        %v272 = vsel %vm225, %v192, 0
        %274 = vmatprep.subr.bf16.mxu0 0
        %275 = vmatpush1.bf16.msra.mxu0 %v217
        %276 = vmatprep.subr.bf16.mxu0 0
        %277 = vmatpush1.bf16.msra.mxu0 %v218
        %278 = vmatprep.subr.bf16.mxu0 0
        %279 = vmatpush1.bf16.msra.mxu0 %v219
        %280 = vmatprep.subr.bf16.mxu0 0
        %281 = vmatpush1.bf16.msra.mxu0 %v220
        %282 = vmatprep.subr.bf16.mxu0 0
        %283 = vmatpush1.bf16.msra.mxu0 0
        %284 = vmatprep.subr.bf16.mxu0 0
        %285 = vmatpush1.bf16.msra.mxu0 0
        %286 = vmatprep.subr.bf16.mxu0 0
        %287 = vmatpush1.bf16.msra.mxu0 0
        %288 = vmatprep.subr.bf16.mxu0 0
        %289 = vmatpush1.bf16.msra.mxu0 0
        %290 = vmatprep.subr.bf16.mxu0 0
        %291 = vmatpush1.bf16.msra.mxu0 0
        %292 = vmatprep.subr.bf16.mxu0 0
        %293 = vmatpush1.bf16.msra.mxu0 0
        %294 = vmatprep.subr.bf16.mxu0 0
        %295 = vmatpush1.bf16.msra.mxu0 0
        %296 = vmatprep.subr.bf16.mxu0 0
        %297 = vmatpush1.bf16.msra.mxu0 0
        %298 = vmatprep.subr.bf16.mxu0 0
        %299 = vmatpush1.bf16.msra.mxu0 0
        %300 = vmatprep.subr.bf16.mxu0 0
        %301 = vmatpush1.bf16.msra.mxu0 0
        %302 = vmatprep.subr.bf16.mxu0 0
        %303 = vmatpush1.bf16.msra.mxu0 0
        %304 = vmatprep.subr.bf16.mxu0 0
        %305 = vmatpush1.bf16.msra.mxu0 0
        %306 = vmatprep.mubr.bf16.mxu0 0
        %307 = vmatmul.mubr.bf16.gmra.mrb[0].mxu0 %v227
        %v308 = vpop.f32.mrb[0].mxu0
        %v309 = vadd.f32 0.0, %v308
        %v310 = vpop.f32.mrb[0].mxu0
        %v311 = vpop.f32.mrb[0].mxu0
        %v312 = vadd.f32 0.0, %v311
        %v313 = vpop.f32.mrb[0].mxu0
        %314 = vmatprep.mubr.bf16.mxu0 0
        %315 = vmatmul.mubr.bf16.gmra.mrb[0].mxu0 %v230
        %v316 = vpop.f32.mrb[0].mxu0
        %v317 = vadd.f32 0.0, %v316
        %v318 = vpop.f32.mrb[0].mxu0
        %v319 = vpop.f32.mrb[0].mxu0
        %v320 = vadd.f32 0.0, %v319
        %v321 = vpop.f32.mrb[0].mxu0
        %322 = vmatprep.mubr.bf16.mxu0 0
        %323 = vmatmul.mubr.bf16.gmra.mrb[0].mxu0 %v233
        %v324 = vpop.f32.mrb[0].mxu0
        %v325 = vadd.f32 0.0, %v324
        %v326 = vpop.f32.mrb[0].mxu0
        %v327 = vpop.f32.mrb[0].mxu0
        %v328 = vadd.f32 0.0, %v327
        %v329 = vpop.f32.mrb[0].mxu0
        %330 = vmatprep.mubr.bf16.mxu0 0
        %331 = vmatmul.mubr.bf16.gmra.mrb[0].mxu0 %v236
        %v332 = vpop.f32.mrb[0].mxu0
        %v333 = vadd.f32 0.0, %v332
        %v334 = vpop.f32.mrb[0].mxu0
        %v335 = vpop.f32.mrb[0].mxu0
        %v336 = vadd.f32 0.0, %v335
        %v337 = vpop.f32.mrb[0].mxu0
        %338 = vmatprep.mubr.bf16.mxu0 0
        %339 = vmatmul.mubr.bf16.gmra.mrb[0].mxu0 %v239
        %v340 = vpop.f32.mrb[0].mxu0
        %v341 = vadd.f32 0.0, %v340
        %v342 = vpop.f32.mrb[0].mxu0
        %v343 = vpop.f32.mrb[0].mxu0
        %v344 = vadd.f32 0.0, %v343
        %v345 = vpop.f32.mrb[0].mxu0
        %346 = vmatprep.mubr.bf16.mxu0 0
        %347 = vmatmul.mubr.bf16.gmra.mrb[0].mxu0 %v242
        %v348 = vpop.f32.mrb[0].mxu0
        %v349 = vadd.f32 0.0, %v348
        %v350 = vpop.f32.mrb[0].mxu0
        %v351 = vpop.f32.mrb[0].mxu0
        %v352 = vadd.f32 0.0, %v351
        %v353 = vpop.f32.mrb[0].mxu0
        %354 = vmatprep.mubr.bf16.mxu0 0
        %355 = vmatmul.mubr.bf16.gmra.mrb[0].mxu0 %v245
        %v356 = vpop.f32.mrb[0].mxu0
        %v357 = vadd.f32 0.0, %v356
        %v358 = vpop.f32.mrb[0].mxu0
        %v359 = vpop.f32.mrb[0].mxu0
        %v360 = vadd.f32 0.0, %v359
        %v361 = vpop.f32.mrb[0].mxu0
        %362 = vmatprep.mubr.bf16.mxu0 0
        %363 = vmatmul.mubr.bf16.gmra.mrb[0].mxu0 %v248
        %v364 = vpop.f32.mrb[0].mxu0
        %v365 = vadd.f32 0.0, %v364
        %v366 = vpop.f32.mrb[0].mxu0
        %v367 = vpop.f32.mrb[0].mxu0
        %v368 = vadd.f32 0.0, %v367
        %v369 = vpop.f32.mrb[0].mxu0
        %370 = vmatprep.mubr.bf16.mxu0 0
        %371 = vmatmul.mubr.bf16.gmra.mrb[0].mxu0 %v251
        %v372 = vpop.f32.mrb[0].mxu0
        %v373 = vadd.f32 0.0, %v372
        %v374 = vpop.f32.mrb[0].mxu0
        %v375 = vpop.f32.mrb[0].mxu0
        %v376 = vadd.f32 0.0, %v375
        %v377 = vpop.f32.mrb[0].mxu0
        %378 = vmatprep.mubr.bf16.mxu0 0
        %379 = vmatmul.mubr.bf16.gmra.mrb[0].mxu0 %v254
        %v380 = vpop.f32.mrb[0].mxu0
        %v381 = vadd.f32 0.0, %v380
        %v382 = vpop.f32.mrb[0].mxu0
        %v383 = vpop.f32.mrb[0].mxu0
        %v384 = vadd.f32 0.0, %v383
        %v385 = vpop.f32.mrb[0].mxu0
        %386 = vmatprep.mubr.bf16.mxu0 0
        %387 = vmatmul.mubr.bf16.gmra.mrb[0].mxu0 %v257
        %v388 = vpop.f32.mrb[0].mxu0
        %v389 = vadd.f32 0.0, %v388
        %v390 = vpop.f32.mrb[0].mxu0
        %v391 = vpop.f32.mrb[0].mxu0
        %v392 = vadd.f32 0.0, %v391
        %v393 = vpop.f32.mrb[0].mxu0
        %394 = vmatprep.mubr.bf16.mxu0 0
        %395 = vmatmul.mubr.bf16.gmra.mrb[0].mxu0 %v260
        %v396 = vpop.f32.mrb[0].mxu0
        %v397 = vadd.f32 0.0, %v396
        %v398 = vpop.f32.mrb[0].mxu0
        %v399 = vpop.f32.mrb[0].mxu0
        %v400 = vadd.f32 0.0, %v399
        %v401 = vpop.f32.mrb[0].mxu0
        %402 = vmatprep.mubr.bf16.mxu0 0
        %403 = vmatmul.mubr.bf16.gmra.mrb[0].mxu0 %v263
        %v404 = vpop.f32.mrb[0].mxu0
        %v405 = vadd.f32 0.0, %v404
        %v406 = vpop.f32.mrb[0].mxu0
        %v407 = vpop.f32.mrb[0].mxu0
        %v408 = vadd.f32 0.0, %v407
        %v409 = vpop.f32.mrb[0].mxu0
        %410 = vmatprep.mubr.bf16.mxu0 0
        %411 = vmatmul.mubr.bf16.gmra.mrb[0].mxu0 %v266
        %v412 = vpop.f32.mrb[0].mxu0
        %v413 = vadd.f32 0.0, %v412
        %v414 = vpop.f32.mrb[0].mxu0
        %v415 = vpop.f32.mrb[0].mxu0
        %v416 = vadd.f32 0.0, %v415
        %v417 = vpop.f32.mrb[0].mxu0
        %418 = vmatprep.mubr.bf16.mxu0 0
        %419 = vmatmul.mubr.bf16.gmra.mrb[0].mxu0 %v269
        %v420 = vpop.f32.mrb[0].mxu0
        %v421 = vadd.f32 0.0, %v420
        %v422 = vpop.f32.mrb[0].mxu0
        %v423 = vpop.f32.mrb[0].mxu0
        %v424 = vadd.f32 0.0, %v423
        %v425 = vpop.f32.mrb[0].mxu0
        %426 = vmatprep.mubr.bf16.mxu0 0
        %427 = vmatmul.mubr.bf16.gmra.mrb[0].mxu0 %v272
        %v428 = vpop.f32.mrb[0].mxu0
        %v429 = vadd.f32 0.0, %v428
        %v430 = vpop.f32.mrb[0].mxu0
        %v431 = vpop.f32.mrb[0].mxu0
        %v432 = vadd.f32 0.0, %v431
        %v433 = vpop.f32.mrb[0].mxu0
        %434 = vdwg.mxu0
        %v435 = vpack.c.bf16 %v312, %v309
        %v436 = vpack.c.bf16 %v320, %v317
        %v437 = vpack.c.bf16 %v328, %v325
        %v438 = vpack.c.bf16 %v336, %v333
        %v439 = vpack.c.bf16 %v344, %v341
        %v440 = vpack.c.bf16 %v352, %v349
        %v441 = vpack.c.bf16 %v360, %v357
        %v442 = vpack.c.bf16 %v368, %v365
        %v443 = vpack.c.bf16 %v376, %v373
        %v444 = vpack.c.bf16 %v384, %v381
        %v445 = vpack.c.bf16 %v392, %v389
        %v446 = vpack.c.bf16 %v400, %v397
        %v447 = vpack.c.bf16 %v408, %v405
        %v448 = vpack.c.bf16 %v416, %v413
        %v449 = vpack.c.bf16 %v424, %v421
        %v450 = vpack.c.bf16 %v432, %v429
        %453 = vrot.lane.b32.xlu0 %v435, 112
        %v454 = vpop.permute.xlu0 %453
        %455 = vrot.lane.b32.xlu0 %v436, 112
        %v456 = vpop.permute.xlu0 %455
        %vm457 = vcmask 130048
        %v459 = vsel %vm457, %v454, 0
        %v462 = vsel %vm457, %v456, 0
        %v465 = vsel %vm457, %v435, 0
        %v468 = vsel %vm457, %v436, 0
        %470 = vmatprep.subr.bf16.mxu0 0
        %471 = vmatpush1.bf16.xpose.msra.mxu0 %v465
        %472 = vmatprep.subr.bf16.mxu0 0
        %473 = vmatpush1.bf16.xpose.msra.mxu0 %v468
        %474 = vmatprep.subr.bf16.mxu0 0
        %475 = vmatpush1.bf16.xpose.msra.mxu0 0
        %476 = vmatprep.subr.bf16.mxu0 0
        %477 = vmatpush1.bf16.xpose.msra.mxu0 0
        %478 = vmatprep.subr.bf16.mxu0 0
        %479 = vmatpush1.bf16.xpose.msra.mxu0 0
        %480 = vmatprep.subr.bf16.mxu0 0
        %481 = vmatpush1.bf16.xpose.msra.mxu0 0
        %482 = vmatprep.subr.bf16.mxu0 0
        %483 = vmatpush1.bf16.xpose.msra.mxu0 0
        %484 = vmatprep.subr.bf16.mxu0 0
        %485 = vmatpush1.bf16.xpose.msra.mxu0 0
        %486 = vmatprep.subr.bf16.mxu0 0
        %487 = vmatpush1.bf16.xpose.msra.mxu0 0
        %488 = vmatprep.subr.bf16.mxu0 0
        %489 = vmatpush1.bf16.xpose.msra.mxu0 0
        %490 = vmatprep.subr.bf16.mxu0 0
        %491 = vmatpush1.bf16.xpose.msra.mxu0 0
        %492 = vmatprep.subr.bf16.mxu0 0
        %493 = vmatpush1.bf16.xpose.msra.mxu0 0
        %494 = vmatprep.subr.bf16.mxu0 0
        %495 = vmatpush1.bf16.xpose.msra.mxu0 0
        %496 = vmatprep.subr.bf16.mxu0 0
        %497 = vmatpush1.bf16.xpose.msra.mxu0 0
        %498 = vmatprep.subr.bf16.mxu0 0
        %499 = vmatpush1.bf16.xpose.msra.mxu0 0
        %500 = vmatprep.subr.bf16.mxu0 0
        %501 = vmatpush1.bf16.xpose.msra.mxu0 0
        %502 = vmatprep.mubr.bf16.mxu0 0
        %503 = vmatmul.mubr.bf16.gmra.mrb[0].mxu0 %v459
        %v504 = vpop.f32.mrb[0].mxu0
        %v505 = vadd.f32 0.0, %v504
        %v506 = vpop.f32.mrb[0].mxu0
        %v507 = vpop.f32.mrb[0].mxu0
        %v508 = vadd.f32 0.0, %v507
        %v509 = vpop.f32.mrb[0].mxu0
        %510 = vmatprep.mubr.bf16.mxu0 0
        %511 = vmatmul.mubr.bf16.gmra.mrb[0].mxu0 %v462
        %v512 = vpop.f32.mrb[0].mxu0
        %v513 = vadd.f32 0.0, %v512
        %v514 = vpop.f32.mrb[0].mxu0
        %v515 = vpop.f32.mrb[0].mxu0
        %v516 = vadd.f32 0.0, %v515
        %v517 = vpop.f32.mrb[0].mxu0
        %518 = vdwg.mxu0
        %521 = vrot.lane.b32.xlu0 %v437, 112
        %v522 = vpop.permute.xlu0 %521
        %523 = vrot.lane.b32.xlu0 %v438, 112
        %v524 = vpop.permute.xlu0 %523
        %v526 = vsel %vm457, %v522, 0
        %v529 = vsel %vm457, %v524, 0
        %v532 = vsel %vm457, %v437, 0
        %v535 = vsel %vm457, %v438, 0
        %537 = vmatprep.subr.bf16.mxu0 0
        %538 = vmatpush1.bf16.xpose.msra.mxu0 %v532
        %539 = vmatprep.subr.bf16.mxu0 0
        %540 = vmatpush1.bf16.xpose.msra.mxu0 %v535
        %541 = vmatprep.subr.bf16.mxu0 0
        %542 = vmatpush1.bf16.xpose.msra.mxu0 0
        %543 = vmatprep.subr.bf16.mxu0 0
        %544 = vmatpush1.bf16.xpose.msra.mxu0 0
        %545 = vmatprep.subr.bf16.mxu0 0
        %546 = vmatpush1.bf16.xpose.msra.mxu0 0
        %547 = vmatprep.subr.bf16.mxu0 0
        %548 = vmatpush1.bf16.xpose.msra.mxu0 0
        %549 = vmatprep.subr.bf16.mxu0 0
        %550 = vmatpush1.bf16.xpose.msra.mxu0 0
        %551 = vmatprep.subr.bf16.mxu0 0
        %552 = vmatpush1.bf16.xpose.msra.mxu0 0
        %553 = vmatprep.subr.bf16.mxu0 0
        %554 = vmatpush1.bf16.xpose.msra.mxu0 0
        %555 = vmatprep.subr.bf16.mxu0 0
        %556 = vmatpush1.bf16.xpose.msra.mxu0 0
        %557 = vmatprep.subr.bf16.mxu0 0
        %558 = vmatpush1.bf16.xpose.msra.mxu0 0
        %559 = vmatprep.subr.bf16.mxu0 0
        %560 = vmatpush1.bf16.xpose.msra.mxu0 0
        %561 = vmatprep.subr.bf16.mxu0 0
        %562 = vmatpush1.bf16.xpose.msra.mxu0 0
        %563 = vmatprep.subr.bf16.mxu0 0
        %564 = vmatpush1.bf16.xpose.msra.mxu0 0
        %565 = vmatprep.subr.bf16.mxu0 0
        %566 = vmatpush1.bf16.xpose.msra.mxu0 0
        %567 = vmatprep.subr.bf16.mxu0 0
        %568 = vmatpush1.bf16.xpose.msra.mxu0 0
        %569 = vmatprep.mubr.bf16.mxu0 0
        %570 = vmatmul.mubr.bf16.gmra.mrb[0].mxu0 %v526
        %v571 = vpop.f32.mrb[0].mxu0
        %v572 = vadd.f32 0.0, %v571
        %v573 = vpop.f32.mrb[0].mxu0
        %v574 = vpop.f32.mrb[0].mxu0
        %v575 = vadd.f32 0.0, %v574
        %v576 = vpop.f32.mrb[0].mxu0
        %577 = vmatprep.mubr.bf16.mxu0 0
        %578 = vmatmul.mubr.bf16.gmra.mrb[0].mxu0 %v529
        %v579 = vpop.f32.mrb[0].mxu0
        %v580 = vadd.f32 0.0, %v579
        %v581 = vpop.f32.mrb[0].mxu0
        %v582 = vpop.f32.mrb[0].mxu0
        %v583 = vadd.f32 0.0, %v582
        %v584 = vpop.f32.mrb[0].mxu0
        %585 = vdwg.mxu0
        %588 = vrot.lane.b32.xlu0 %v439, 112
        %v589 = vpop.permute.xlu0 %588
        %590 = vrot.lane.b32.xlu0 %v440, 112
        %v591 = vpop.permute.xlu0 %590
        %v593 = vsel %vm457, %v589, 0
        %v596 = vsel %vm457, %v591, 0
        %v599 = vsel %vm457, %v439, 0
        %v602 = vsel %vm457, %v440, 0
        %604 = vmatprep.subr.bf16.mxu0 0
        %605 = vmatpush1.bf16.xpose.msra.mxu0 %v599
        %606 = vmatprep.subr.bf16.mxu0 0
        %607 = vmatpush1.bf16.xpose.msra.mxu0 %v602
        %608 = vmatprep.subr.bf16.mxu0 0
        %609 = vmatpush1.bf16.xpose.msra.mxu0 0
        %610 = vmatprep.subr.bf16.mxu0 0
        %611 = vmatpush1.bf16.xpose.msra.mxu0 0
        %612 = vmatprep.subr.bf16.mxu0 0
        %613 = vmatpush1.bf16.xpose.msra.mxu0 0
        %614 = vmatprep.subr.bf16.mxu0 0
        %615 = vmatpush1.bf16.xpose.msra.mxu0 0
        %616 = vmatprep.subr.bf16.mxu0 0
        %617 = vmatpush1.bf16.xpose.msra.mxu0 0
        %618 = vmatprep.subr.bf16.mxu0 0
        %619 = vmatpush1.bf16.xpose.msra.mxu0 0
        %620 = vmatprep.subr.bf16.mxu0 0
        %621 = vmatpush1.bf16.xpose.msra.mxu0 0
        %622 = vmatprep.subr.bf16.mxu0 0
        %623 = vmatpush1.bf16.xpose.msra.mxu0 0
        %624 = vmatprep.subr.bf16.mxu0 0
        %625 = vmatpush1.bf16.xpose.msra.mxu0 0
        %626 = vmatprep.subr.bf16.mxu0 0
        %627 = vmatpush1.bf16.xpose.msra.mxu0 0
        %628 = vmatprep.subr.bf16.mxu0 0
        %629 = vmatpush1.bf16.xpose.msra.mxu0 0
        %630 = vmatprep.subr.bf16.mxu0 0
        %631 = vmatpush1.bf16.xpose.msra.mxu0 0
        %632 = vmatprep.subr.bf16.mxu0 0
        %633 = vmatpush1.bf16.xpose.msra.mxu0 0
        %634 = vmatprep.subr.bf16.mxu0 0
        %635 = vmatpush1.bf16.xpose.msra.mxu0 0
        %636 = vmatprep.mubr.bf16.mxu0 0
        %637 = vmatmul.mubr.bf16.gmra.mrb[0].mxu0 %v593
        %v638 = vpop.f32.mrb[0].mxu0
        %v639 = vadd.f32 0.0, %v638
        %v640 = vpop.f32.mrb[0].mxu0
        %v641 = vpop.f32.mrb[0].mxu0
        %v642 = vadd.f32 0.0, %v641
        %v643 = vpop.f32.mrb[0].mxu0
        %644 = vmatprep.mubr.bf16.mxu0 0
        %645 = vmatmul.mubr.bf16.gmra.mrb[0].mxu0 %v596
        %v646 = vpop.f32.mrb[0].mxu0
        %v647 = vadd.f32 0.0, %v646
        %v648 = vpop.f32.mrb[0].mxu0
        %v649 = vpop.f32.mrb[0].mxu0
        %v650 = vadd.f32 0.0, %v649
        %v651 = vpop.f32.mrb[0].mxu0
        %652 = vdwg.mxu0
        %655 = vrot.lane.b32.xlu0 %v441, 112
        %v656 = vpop.permute.xlu0 %655
        %657 = vrot.lane.b32.xlu0 %v442, 112
        %v658 = vpop.permute.xlu0 %657
        %v660 = vsel %vm457, %v656, 0
        %v663 = vsel %vm457, %v658, 0
        %v666 = vsel %vm457, %v441, 0
        %v669 = vsel %vm457, %v442, 0
        %671 = vmatprep.subr.bf16.mxu0 0
        %672 = vmatpush1.bf16.xpose.msra.mxu0 %v666
        %673 = vmatprep.subr.bf16.mxu0 0
        %674 = vmatpush1.bf16.xpose.msra.mxu0 %v669
        %675 = vmatprep.subr.bf16.mxu0 0
        %676 = vmatpush1.bf16.xpose.msra.mxu0 0
        %677 = vmatprep.subr.bf16.mxu0 0
        %678 = vmatpush1.bf16.xpose.msra.mxu0 0
        %679 = vmatprep.subr.bf16.mxu0 0
        %680 = vmatpush1.bf16.xpose.msra.mxu0 0
        %681 = vmatprep.subr.bf16.mxu0 0
        %682 = vmatpush1.bf16.xpose.msra.mxu0 0
        %683 = vmatprep.subr.bf16.mxu0 0
        %684 = vmatpush1.bf16.xpose.msra.mxu0 0
        %685 = vmatprep.subr.bf16.mxu0 0
        %686 = vmatpush1.bf16.xpose.msra.mxu0 0
        %687 = vmatprep.subr.bf16.mxu0 0
        %688 = vmatpush1.bf16.xpose.msra.mxu0 0
        %689 = vmatprep.subr.bf16.mxu0 0
        %690 = vmatpush1.bf16.xpose.msra.mxu0 0
        %691 = vmatprep.subr.bf16.mxu0 0
        %692 = vmatpush1.bf16.xpose.msra.mxu0 0
        %693 = vmatprep.subr.bf16.mxu0 0
        %694 = vmatpush1.bf16.xpose.msra.mxu0 0
        %695 = vmatprep.subr.bf16.mxu0 0
        %696 = vmatpush1.bf16.xpose.msra.mxu0 0
        %697 = vmatprep.subr.bf16.mxu0 0
        %698 = vmatpush1.bf16.xpose.msra.mxu0 0
        %699 = vmatprep.subr.bf16.mxu0 0
        %700 = vmatpush1.bf16.xpose.msra.mxu0 0
        %701 = vmatprep.subr.bf16.mxu0 0
        %702 = vmatpush1.bf16.xpose.msra.mxu0 0
        %703 = vmatprep.mubr.bf16.mxu0 0
        %704 = vmatmul.mubr.bf16.gmra.mrb[0].mxu0 %v660
        %v705 = vpop.f32.mrb[0].mxu0
        %v706 = vadd.f32 0.0, %v705
        %v707 = vpop.f32.mrb[0].mxu0
        %v708 = vpop.f32.mrb[0].mxu0
        %v709 = vadd.f32 0.0, %v708
        %v710 = vpop.f32.mrb[0].mxu0
        %711 = vmatprep.mubr.bf16.mxu0 0
        %712 = vmatmul.mubr.bf16.gmra.mrb[0].mxu0 %v663
        %v713 = vpop.f32.mrb[0].mxu0
        %v714 = vadd.f32 0.0, %v713
        %v715 = vpop.f32.mrb[0].mxu0
        %v716 = vpop.f32.mrb[0].mxu0
        %v717 = vadd.f32 0.0, %v716
        %v718 = vpop.f32.mrb[0].mxu0
        %719 = vdwg.mxu0
        %722 = vrot.lane.b32.xlu0 %v443, 112
        %v723 = vpop.permute.xlu0 %722
        %724 = vrot.lane.b32.xlu0 %v444, 112
        %v725 = vpop.permute.xlu0 %724
        %v727 = vsel %vm457, %v723, 0
        %v730 = vsel %vm457, %v725, 0
        %v733 = vsel %vm457, %v443, 0
        %v736 = vsel %vm457, %v444, 0
        %738 = vmatprep.subr.bf16.mxu0 0
        %739 = vmatpush1.bf16.xpose.msra.mxu0 %v733
        %740 = vmatprep.subr.bf16.mxu0 0
        %741 = vmatpush1.bf16.xpose.msra.mxu0 %v736
        %742 = vmatprep.subr.bf16.mxu0 0
        %743 = vmatpush1.bf16.xpose.msra.mxu0 0
        %744 = vmatprep.subr.bf16.mxu0 0
        %745 = vmatpush1.bf16.xpose.msra.mxu0 0
        %746 = vmatprep.subr.bf16.mxu0 0
        %747 = vmatpush1.bf16.xpose.msra.mxu0 0
        %748 = vmatprep.subr.bf16.mxu0 0
        %749 = vmatpush1.bf16.xpose.msra.mxu0 0
        %750 = vmatprep.subr.bf16.mxu0 0
        %751 = vmatpush1.bf16.xpose.msra.mxu0 0
        %752 = vmatprep.subr.bf16.mxu0 0
        %753 = vmatpush1.bf16.xpose.msra.mxu0 0
        %754 = vmatprep.subr.bf16.mxu0 0
        %755 = vmatpush1.bf16.xpose.msra.mxu0 0
        %756 = vmatprep.subr.bf16.mxu0 0
        %757 = vmatpush1.bf16.xpose.msra.mxu0 0
        %758 = vmatprep.subr.bf16.mxu0 0
        %759 = vmatpush1.bf16.xpose.msra.mxu0 0
        %760 = vmatprep.subr.bf16.mxu0 0
        %761 = vmatpush1.bf16.xpose.msra.mxu0 0
        %762 = vmatprep.subr.bf16.mxu0 0
        %763 = vmatpush1.bf16.xpose.msra.mxu0 0
        %764 = vmatprep.subr.bf16.mxu0 0
        %765 = vmatpush1.bf16.xpose.msra.mxu0 0
        %766 = vmatprep.subr.bf16.mxu0 0
        %767 = vmatpush1.bf16.xpose.msra.mxu0 0
        %768 = vmatprep.subr.bf16.mxu0 0
        %769 = vmatpush1.bf16.xpose.msra.mxu0 0
        %770 = vmatprep.mubr.bf16.mxu0 0
        %771 = vmatmul.mubr.bf16.gmra.mrb[0].mxu0 %v727
        %v772 = vpop.f32.mrb[0].mxu0
        %v773 = vadd.f32 0.0, %v772
        %v774 = vpop.f32.mrb[0].mxu0
        %v775 = vpop.f32.mrb[0].mxu0
        %v776 = vadd.f32 0.0, %v775
        %v777 = vpop.f32.mrb[0].mxu0
        %778 = vmatprep.mubr.bf16.mxu0 0
        %779 = vmatmul.mubr.bf16.gmra.mrb[0].mxu0 %v730
        %v780 = vpop.f32.mrb[0].mxu0
        %v781 = vadd.f32 0.0, %v780
        %v782 = vpop.f32.mrb[0].mxu0
        %v783 = vpop.f32.mrb[0].mxu0
        %v784 = vadd.f32 0.0, %v783
        %v785 = vpop.f32.mrb[0].mxu0
        %786 = vdwg.mxu0
        %789 = vrot.lane.b32.xlu0 %v445, 112
        %v790 = vpop.permute.xlu0 %789
        %791 = vrot.lane.b32.xlu0 %v446, 112
        %v792 = vpop.permute.xlu0 %791
        %v794 = vsel %vm457, %v790, 0
        %v797 = vsel %vm457, %v792, 0
        %v800 = vsel %vm457, %v445, 0
        %v803 = vsel %vm457, %v446, 0
        %805 = vmatprep.subr.bf16.mxu0 0
        %806 = vmatpush1.bf16.xpose.msra.mxu0 %v800
        %807 = vmatprep.subr.bf16.mxu0 0
        %808 = vmatpush1.bf16.xpose.msra.mxu0 %v803
        %809 = vmatprep.subr.bf16.mxu0 0
        %810 = vmatpush1.bf16.xpose.msra.mxu0 0
        %811 = vmatprep.subr.bf16.mxu0 0
        %812 = vmatpush1.bf16.xpose.msra.mxu0 0
        %813 = vmatprep.subr.bf16.mxu0 0
        %814 = vmatpush1.bf16.xpose.msra.mxu0 0
        %815 = vmatprep.subr.bf16.mxu0 0
        %816 = vmatpush1.bf16.xpose.msra.mxu0 0
        %817 = vmatprep.subr.bf16.mxu0 0
        %818 = vmatpush1.bf16.xpose.msra.mxu0 0
        %819 = vmatprep.subr.bf16.mxu0 0
        %820 = vmatpush1.bf16.xpose.msra.mxu0 0
        %821 = vmatprep.subr.bf16.mxu0 0
        %822 = vmatpush1.bf16.xpose.msra.mxu0 0
        %823 = vmatprep.subr.bf16.mxu0 0
        %824 = vmatpush1.bf16.xpose.msra.mxu0 0
        %825 = vmatprep.subr.bf16.mxu0 0
        %826 = vmatpush1.bf16.xpose.msra.mxu0 0
        %827 = vmatprep.subr.bf16.mxu0 0
        %828 = vmatpush1.bf16.xpose.msra.mxu0 0
        %829 = vmatprep.subr.bf16.mxu0 0
        %830 = vmatpush1.bf16.xpose.msra.mxu0 0
        %831 = vmatprep.subr.bf16.mxu0 0
        %832 = vmatpush1.bf16.xpose.msra.mxu0 0
        %833 = vmatprep.subr.bf16.mxu0 0
        %834 = vmatpush1.bf16.xpose.msra.mxu0 0
        %835 = vmatprep.subr.bf16.mxu0 0
        %836 = vmatpush1.bf16.xpose.msra.mxu0 0
        %837 = vmatprep.mubr.bf16.mxu0 0
        %838 = vmatmul.mubr.bf16.gmra.mrb[0].mxu0 %v794
        %v839 = vpop.f32.mrb[0].mxu0
        %v840 = vadd.f32 0.0, %v839
        %v841 = vpop.f32.mrb[0].mxu0
        %v842 = vpop.f32.mrb[0].mxu0
        %v843 = vadd.f32 0.0, %v842
        %v844 = vpop.f32.mrb[0].mxu0
        %845 = vmatprep.mubr.bf16.mxu0 0
        %846 = vmatmul.mubr.bf16.gmra.mrb[0].mxu0 %v797
        %v847 = vpop.f32.mrb[0].mxu0
        %v848 = vadd.f32 0.0, %v847
        %v849 = vpop.f32.mrb[0].mxu0
        %v850 = vpop.f32.mrb[0].mxu0
        %v851 = vadd.f32 0.0, %v850
        %v852 = vpop.f32.mrb[0].mxu0
        %853 = vdwg.mxu0
        %856 = vrot.lane.b32.xlu0 %v447, 112
        %v857 = vpop.permute.xlu0 %856
        %858 = vrot.lane.b32.xlu0 %v448, 112
        %v859 = vpop.permute.xlu0 %858
        %v861 = vsel %vm457, %v857, 0
        %v864 = vsel %vm457, %v859, 0
        %v867 = vsel %vm457, %v447, 0
        %v870 = vsel %vm457, %v448, 0
        %872 = vmatprep.subr.bf16.mxu0 0
        %873 = vmatpush1.bf16.xpose.msra.mxu0 %v867
        %874 = vmatprep.subr.bf16.mxu0 0
        %875 = vmatpush1.bf16.xpose.msra.mxu0 %v870
        %876 = vmatprep.subr.bf16.mxu0 0
        %877 = vmatpush1.bf16.xpose.msra.mxu0 0
        %878 = vmatprep.subr.bf16.mxu0 0
        %879 = vmatpush1.bf16.xpose.msra.mxu0 0
        %880 = vmatprep.subr.bf16.mxu0 0
        %881 = vmatpush1.bf16.xpose.msra.mxu0 0
        %882 = vmatprep.subr.bf16.mxu0 0
        %883 = vmatpush1.bf16.xpose.msra.mxu0 0
        %884 = vmatprep.subr.bf16.mxu0 0
        %885 = vmatpush1.bf16.xpose.msra.mxu0 0
        %886 = vmatprep.subr.bf16.mxu0 0
        %887 = vmatpush1.bf16.xpose.msra.mxu0 0
        %888 = vmatprep.subr.bf16.mxu0 0
        %889 = vmatpush1.bf16.xpose.msra.mxu0 0
        %890 = vmatprep.subr.bf16.mxu0 0
        %891 = vmatpush1.bf16.xpose.msra.mxu0 0
        %892 = vmatprep.subr.bf16.mxu0 0
        %893 = vmatpush1.bf16.xpose.msra.mxu0 0
        %894 = vmatprep.subr.bf16.mxu0 0
        %895 = vmatpush1.bf16.xpose.msra.mxu0 0
        %896 = vmatprep.subr.bf16.mxu0 0
        %897 = vmatpush1.bf16.xpose.msra.mxu0 0
        %898 = vmatprep.subr.bf16.mxu0 0
        %899 = vmatpush1.bf16.xpose.msra.mxu0 0
        %900 = vmatprep.subr.bf16.mxu0 0
        %901 = vmatpush1.bf16.xpose.msra.mxu0 0
        %902 = vmatprep.subr.bf16.mxu0 0
        %903 = vmatpush1.bf16.xpose.msra.mxu0 0
        %904 = vmatprep.mubr.bf16.mxu0 0
        %905 = vmatmul.mubr.bf16.gmra.mrb[0].mxu0 %v861
        %v906 = vpop.f32.mrb[0].mxu0
        %v907 = vadd.f32 0.0, %v906
        %v908 = vpop.f32.mrb[0].mxu0
        %v909 = vpop.f32.mrb[0].mxu0
        %v910 = vadd.f32 0.0, %v909
        %v911 = vpop.f32.mrb[0].mxu0
        %912 = vmatprep.mubr.bf16.mxu0 0
        %913 = vmatmul.mubr.bf16.gmra.mrb[0].mxu0 %v864
        %v914 = vpop.f32.mrb[0].mxu0
        %v915 = vadd.f32 0.0, %v914
        %v916 = vpop.f32.mrb[0].mxu0
        %v917 = vpop.f32.mrb[0].mxu0
        %v918 = vadd.f32 0.0, %v917
        %v919 = vpop.f32.mrb[0].mxu0
        %920 = vdwg.mxu0
        %923 = vrot.lane.b32.xlu0 %v449, 112
        %v924 = vpop.permute.xlu0 %923
        %925 = vrot.lane.b32.xlu0 %v450, 112
        %v926 = vpop.permute.xlu0 %925
        %v928 = vsel %vm457, %v924, 0
        %v931 = vsel %vm457, %v926, 0
        %v934 = vsel %vm457, %v449, 0
        %v937 = vsel %vm457, %v450, 0
        %939 = vmatprep.subr.bf16.mxu0 0
        %940 = vmatpush1.bf16.xpose.msra.mxu0 %v934
        %941 = vmatprep.subr.bf16.mxu0 0
        %942 = vmatpush1.bf16.xpose.msra.mxu0 %v937
        %943 = vmatprep.subr.bf16.mxu0 0
        %944 = vmatpush1.bf16.xpose.msra.mxu0 0
        %945 = vmatprep.subr.bf16.mxu0 0
        %946 = vmatpush1.bf16.xpose.msra.mxu0 0
        %947 = vmatprep.subr.bf16.mxu0 0
        %948 = vmatpush1.bf16.xpose.msra.mxu0 0
        %949 = vmatprep.subr.bf16.mxu0 0
        %950 = vmatpush1.bf16.xpose.msra.mxu0 0
        %951 = vmatprep.subr.bf16.mxu0 0
        %952 = vmatpush1.bf16.xpose.msra.mxu0 0
        %953 = vmatprep.subr.bf16.mxu0 0
        %954 = vmatpush1.bf16.xpose.msra.mxu0 0
        %955 = vmatprep.subr.bf16.mxu0 0
        %956 = vmatpush1.bf16.xpose.msra.mxu0 0
        %957 = vmatprep.subr.bf16.mxu0 0
        %958 = vmatpush1.bf16.xpose.msra.mxu0 0
        %959 = vmatprep.subr.bf16.mxu0 0
        %960 = vmatpush1.bf16.xpose.msra.mxu0 0
        %961 = vmatprep.subr.bf16.mxu0 0
        %962 = vmatpush1.bf16.xpose.msra.mxu0 0
        %963 = vmatprep.subr.bf16.mxu0 0
        %964 = vmatpush1.bf16.xpose.msra.mxu0 0
        %965 = vmatprep.subr.bf16.mxu0 0
        %966 = vmatpush1.bf16.xpose.msra.mxu0 0
        %967 = vmatprep.subr.bf16.mxu0 0
        %968 = vmatpush1.bf16.xpose.msra.mxu0 0
        %969 = vmatprep.subr.bf16.mxu0 0
        %970 = vmatpush1.bf16.xpose.msra.mxu0 0
        %971 = vmatprep.mubr.bf16.mxu0 0
        %972 = vmatmul.mubr.bf16.gmra.mrb[0].mxu0 %v928
        %v973 = vpop.f32.mrb[0].mxu0
        %v974 = vadd.f32 0.0, %v973
        %v975 = vpop.f32.mrb[0].mxu0
        %v976 = vpop.f32.mrb[0].mxu0
        %v977 = vadd.f32 0.0, %v976
        %v978 = vpop.f32.mrb[0].mxu0
        %979 = vmatprep.mubr.bf16.mxu0 0
        %980 = vmatmul.mubr.bf16.gmra.mrb[0].mxu0 %v931
        %v981 = vpop.f32.mrb[0].mxu0
        %v982 = vadd.f32 0.0, %v981
        %v983 = vpop.f32.mrb[0].mxu0
        %v984 = vpop.f32.mrb[0].mxu0
        %v985 = vadd.f32 0.0, %v984
        %v986 = vpop.f32.mrb[0].mxu0
        %987 = vdwg.mxu0
        %v988 = vlaneseq
        %v989 = vshrl.u32 %v988, 7
        %v990 = vadd.s32 %v989, 8
        %v991 = vadd.s32 %v989, 16
        %v992 = vadd.s32 %v989, 24
        %v993 = vlaneseq
        %v994 = vand.u32 %v993, 127
        %vm995 = vcmp.le.s32.totalorder %v994, %v989
        %vm996 = vcmp.le.s32.totalorder %v994, %v990
        %vm997 = vcmp.le.s32.totalorder %v994, %v991
        %vm998 = vcmp.le.s32.totalorder %v994, %v992
        %v999 = vsel %vm995, %v505, -1e+30
        %v1000 = vsel %vm996, %v508, -1e+30
        %v1001 = vsel %vm997, %v513, -1e+30
        %v1002 = vsel %vm998, %v516, -1e+30
        %v1003 = vsel %vm995, %v572, -1e+30
        %v1004 = vsel %vm996, %v575, -1e+30
        %v1005 = vsel %vm997, %v580, -1e+30
        %v1006 = vsel %vm998, %v583, -1e+30
        %v1007 = vsel %vm995, %v639, -1e+30
        %v1008 = vsel %vm996, %v642, -1e+30
        %v1009 = vsel %vm997, %v647, -1e+30
        %v1010 = vsel %vm998, %v650, -1e+30
        %v1011 = vsel %vm995, %v706, -1e+30
        %v1012 = vsel %vm996, %v709, -1e+30
        %v1013 = vsel %vm997, %v714, -1e+30
        %v1014 = vsel %vm998, %v717, -1e+30
        %v1015 = vsel %vm995, %v773, -1e+30
        %v1016 = vsel %vm996, %v776, -1e+30
        %v1017 = vsel %vm997, %v781, -1e+30
        %v1018 = vsel %vm998, %v784, -1e+30
        %v1019 = vsel %vm995, %v840, -1e+30
        %v1020 = vsel %vm996, %v843, -1e+30
        %v1021 = vsel %vm997, %v848, -1e+30
        %v1022 = vsel %vm998, %v851, -1e+30
        %v1023 = vsel %vm995, %v907, -1e+30
        %v1024 = vsel %vm996, %v910, -1e+30
        %v1025 = vsel %vm997, %v915, -1e+30
        %v1026 = vsel %vm998, %v918, -1e+30
        %v1027 = vsel %vm995, %v974, -1e+30
        %v1028 = vsel %vm996, %v977, -1e+30
        %v1029 = vsel %vm997, %v982, -1e+30
        %v1030 = vsel %vm998, %v985, -1e+30
        %vm1031 = vcmask 261120
        %v1032 = vsel %vm1031, %v999, -inf
        %1033 = vmax.xlane.f32.xlu0 %v1032
        %v1034 = vpop.xlane.xlu0 %1033
        %v1035 = vsel %vm1031, %v1000, -inf
        %1036 = vmax.xlane.f32.xlu0 %v1035
        %v1037 = vpop.xlane.xlu0 %1036
        %v1038 = vsel %vm1031, %v1001, -inf
        %1039 = vmax.xlane.f32.xlu0 %v1038
        %v1040 = vpop.xlane.xlu0 %1039
        %v1041 = vsel %vm1031, %v1002, -inf
        %1042 = vmax.xlane.f32.xlu0 %v1041
        %v1043 = vpop.xlane.xlu0 %1042
        %v1044 = vsel %vm1031, %v1003, -inf
        %1045 = vmax.xlane.f32.xlu0 %v1044
        %v1046 = vpop.xlane.xlu0 %1045
        %v1047 = vsel %vm1031, %v1004, -inf
        %1048 = vmax.xlane.f32.xlu0 %v1047
        %v1049 = vpop.xlane.xlu0 %1048
        %v1050 = vsel %vm1031, %v1005, -inf
        %1051 = vmax.xlane.f32.xlu0 %v1050
        %v1052 = vpop.xlane.xlu0 %1051
        %v1053 = vsel %vm1031, %v1006, -inf
        %1054 = vmax.xlane.f32.xlu0 %v1053
        %v1055 = vpop.xlane.xlu0 %1054
        %v1056 = vsel %vm1031, %v1007, -inf
        %1057 = vmax.xlane.f32.xlu0 %v1056
        %v1058 = vpop.xlane.xlu0 %1057
        %v1059 = vsel %vm1031, %v1008, -inf
        %1060 = vmax.xlane.f32.xlu0 %v1059
        %v1061 = vpop.xlane.xlu0 %1060
        %v1062 = vsel %vm1031, %v1009, -inf
        %1063 = vmax.xlane.f32.xlu0 %v1062
        %v1064 = vpop.xlane.xlu0 %1063
        %v1065 = vsel %vm1031, %v1010, -inf
        %1066 = vmax.xlane.f32.xlu0 %v1065
        %v1067 = vpop.xlane.xlu0 %1066
        %v1068 = vsel %vm1031, %v1011, -inf
        %1069 = vmax.xlane.f32.xlu0 %v1068
        %v1070 = vpop.xlane.xlu0 %1069
        %v1071 = vsel %vm1031, %v1012, -inf
        %1072 = vmax.xlane.f32.xlu0 %v1071
        %v1073 = vpop.xlane.xlu0 %1072
        %v1074 = vsel %vm1031, %v1013, -inf
        %1075 = vmax.xlane.f32.xlu0 %v1074
        %v1076 = vpop.xlane.xlu0 %1075
        %v1077 = vsel %vm1031, %v1014, -inf
        %1078 = vmax.xlane.f32.xlu0 %v1077
        %v1079 = vpop.xlane.xlu0 %1078
        %v1080 = vsel %vm1031, %v1015, -inf
        %1081 = vmax.xlane.f32.xlu0 %v1080
        %v1082 = vpop.xlane.xlu0 %1081
        %v1083 = vsel %vm1031, %v1016, -inf
        %1084 = vmax.xlane.f32.xlu0 %v1083
        %v1085 = vpop.xlane.xlu0 %1084
        %v1086 = vsel %vm1031, %v1017, -inf
        %1087 = vmax.xlane.f32.xlu0 %v1086
        %v1088 = vpop.xlane.xlu0 %1087
        %v1089 = vsel %vm1031, %v1018, -inf
        %1090 = vmax.xlane.f32.xlu0 %v1089
        %v1091 = vpop.xlane.xlu0 %1090
        %v1092 = vsel %vm1031, %v1019, -inf
        %1093 = vmax.xlane.f32.xlu0 %v1092
        %v1094 = vpop.xlane.xlu0 %1093
        %v1095 = vsel %vm1031, %v1020, -inf
        %1096 = vmax.xlane.f32.xlu0 %v1095
        %v1097 = vpop.xlane.xlu0 %1096
        %v1098 = vsel %vm1031, %v1021, -inf
        %1099 = vmax.xlane.f32.xlu0 %v1098
        %v1100 = vpop.xlane.xlu0 %1099
        %v1101 = vsel %vm1031, %v1022, -inf
        %1102 = vmax.xlane.f32.xlu0 %v1101
        %v1103 = vpop.xlane.xlu0 %1102
        %v1104 = vsel %vm1031, %v1023, -inf
        %1105 = vmax.xlane.f32.xlu0 %v1104
        %v1106 = vpop.xlane.xlu0 %1105
        %v1107 = vsel %vm1031, %v1024, -inf
        %1108 = vmax.xlane.f32.xlu0 %v1107
        %v1109 = vpop.xlane.xlu0 %1108
        %v1110 = vsel %vm1031, %v1025, -inf
        %1111 = vmax.xlane.f32.xlu0 %v1110
        %v1112 = vpop.xlane.xlu0 %1111
        %v1113 = vsel %vm1031, %v1026, -inf
        %1114 = vmax.xlane.f32.xlu0 %v1113
        %v1115 = vpop.xlane.xlu0 %1114
        %v1116 = vsel %vm1031, %v1027, -inf
        %1117 = vmax.xlane.f32.xlu0 %v1116
        %v1118 = vpop.xlane.xlu0 %1117
        %v1119 = vsel %vm1031, %v1028, -inf
        %1120 = vmax.xlane.f32.xlu0 %v1119
        %v1121 = vpop.xlane.xlu0 %1120
        %v1122 = vsel %vm1031, %v1029, -inf
        %1123 = vmax.xlane.f32.xlu0 %v1122
        %v1124 = vpop.xlane.xlu0 %1123
        %v1125 = vsel %vm1031, %v1030, -inf
        %1126 = vmax.xlane.f32.xlu0 %v1125
        %v1127 = vpop.xlane.xlu0 %1126
        %v1128 = vsub.f32 %v999, %v1034
        %v1129 = vsub.f32 %v1000, %v1037
        %v1130 = vsub.f32 %v1001, %v1040
        %v1131 = vsub.f32 %v1002, %v1043
        %v1132 = vsub.f32 %v1003, %v1046
        %v1133 = vsub.f32 %v1004, %v1049
        %v1134 = vsub.f32 %v1005, %v1052
        %v1135 = vsub.f32 %v1006, %v1055
        %v1136 = vsub.f32 %v1007, %v1058
        %v1137 = vsub.f32 %v1008, %v1061
        %v1138 = vsub.f32 %v1009, %v1064
        %v1139 = vsub.f32 %v1010, %v1067
        %v1140 = vsub.f32 %v1011, %v1070
        %v1141 = vsub.f32 %v1012, %v1073
        %v1142 = vsub.f32 %v1013, %v1076
        %v1143 = vsub.f32 %v1014, %v1079
        %v1144 = vsub.f32 %v1015, %v1082
        %v1145 = vsub.f32 %v1016, %v1085
        %v1146 = vsub.f32 %v1017, %v1088
        %v1147 = vsub.f32 %v1018, %v1091
        %v1148 = vsub.f32 %v1019, %v1094
        %v1149 = vsub.f32 %v1020, %v1097
        %v1150 = vsub.f32 %v1021, %v1100
        %v1151 = vsub.f32 %v1022, %v1103
        %v1152 = vsub.f32 %v1023, %v1106
        %v1153 = vsub.f32 %v1024, %v1109
        %v1154 = vsub.f32 %v1025, %v1112
        %v1155 = vsub.f32 %v1026, %v1115
        %v1156 = vsub.f32 %v1027, %v1118
        %v1157 = vsub.f32 %v1028, %v1121
        %v1158 = vsub.f32 %v1029, %v1124
        %v1159 = vsub.f32 %v1030, %v1127
        %v1160 = vmul.f32 %v1128, 1.442695
        %v1161 = vpow.pop %v1160
        %v1162 = vmul.f32 %v1129, 1.442695
        %v1163 = vpow.pop %v1162
        %v1164 = vmul.f32 %v1130, 1.442695
        %v1165 = vpow.pop %v1164
        %v1166 = vmul.f32 %v1131, 1.442695
        %v1167 = vpow.pop %v1166
        %v1168 = vmul.f32 %v1132, 1.442695
        %v1169 = vpow.pop %v1168
        %v1170 = vmul.f32 %v1133, 1.442695
        %v1171 = vpow.pop %v1170
        %v1172 = vmul.f32 %v1134, 1.442695
        %v1173 = vpow.pop %v1172
        %v1174 = vmul.f32 %v1135, 1.442695
        %v1175 = vpow.pop %v1174
        %v1176 = vmul.f32 %v1136, 1.442695
        %v1177 = vpow.pop %v1176
        %v1178 = vmul.f32 %v1137, 1.442695
        %v1179 = vpow.pop %v1178
        %v1180 = vmul.f32 %v1138, 1.442695
        %v1181 = vpow.pop %v1180
        %v1182 = vmul.f32 %v1139, 1.442695
        %v1183 = vpow.pop %v1182
        %v1184 = vmul.f32 %v1140, 1.442695
        %v1185 = vpow.pop %v1184
        %v1186 = vmul.f32 %v1141, 1.442695
        %v1187 = vpow.pop %v1186
        %v1188 = vmul.f32 %v1142, 1.442695
        %v1189 = vpow.pop %v1188
        %v1190 = vmul.f32 %v1143, 1.442695
        %v1191 = vpow.pop %v1190
        %v1192 = vmul.f32 %v1144, 1.442695
        %v1193 = vpow.pop %v1192
        %v1194 = vmul.f32 %v1145, 1.442695
        %v1195 = vpow.pop %v1194
        %v1196 = vmul.f32 %v1146, 1.442695
        %v1197 = vpow.pop %v1196
        %v1198 = vmul.f32 %v1147, 1.442695
        %v1199 = vpow.pop %v1198
        %v1200 = vmul.f32 %v1148, 1.442695
        %v1201 = vpow.pop %v1200
        %v1202 = vmul.f32 %v1149, 1.442695
        %v1203 = vpow.pop %v1202
        %v1204 = vmul.f32 %v1150, 1.442695
        %v1205 = vpow.pop %v1204
        %v1206 = vmul.f32 %v1151, 1.442695
        %v1207 = vpow.pop %v1206
        %v1208 = vmul.f32 %v1152, 1.442695
        %v1209 = vpow.pop %v1208
        %v1210 = vmul.f32 %v1153, 1.442695
        %v1211 = vpow.pop %v1210
        %v1212 = vmul.f32 %v1154, 1.442695
        %v1213 = vpow.pop %v1212
        %v1214 = vmul.f32 %v1155, 1.442695
        %v1215 = vpow.pop %v1214
        %v1216 = vmul.f32 %v1156, 1.442695
        %v1217 = vpow.pop %v1216
        %v1218 = vmul.f32 %v1157, 1.442695
        %v1219 = vpow.pop %v1218
        %v1220 = vmul.f32 %v1158, 1.442695
        %v1221 = vpow.pop %v1220
        %v1222 = vmul.f32 %v1159, 1.442695
        %v1223 = vpow.pop %v1222
        %v1224 = vsel %vm1031, %v1161, 0.0
        %1225 = vadd.xlane.f32.xlu0 %v1224
        %v1226 = vpop.xlane.xlu0 %1225
        %v1227 = vsel %vm1031, %v1163, 0.0
        %1228 = vadd.xlane.f32.xlu0 %v1227
        %v1229 = vpop.xlane.xlu0 %1228
        %v1230 = vsel %vm1031, %v1165, 0.0
        %1231 = vadd.xlane.f32.xlu0 %v1230
        %v1232 = vpop.xlane.xlu0 %1231
        %v1233 = vsel %vm1031, %v1167, 0.0
        %1234 = vadd.xlane.f32.xlu0 %v1233
        %v1235 = vpop.xlane.xlu0 %1234
        %v1236 = vsel %vm1031, %v1169, 0.0
        %1237 = vadd.xlane.f32.xlu0 %v1236
        %v1238 = vpop.xlane.xlu0 %1237
        %v1239 = vsel %vm1031, %v1171, 0.0
        %1240 = vadd.xlane.f32.xlu0 %v1239
        %v1241 = vpop.xlane.xlu0 %1240
        %v1242 = vsel %vm1031, %v1173, 0.0
        %1243 = vadd.xlane.f32.xlu0 %v1242
        %v1244 = vpop.xlane.xlu0 %1243
        %v1245 = vsel %vm1031, %v1175, 0.0
        %1246 = vadd.xlane.f32.xlu0 %v1245
        %v1247 = vpop.xlane.xlu0 %1246
        %v1248 = vsel %vm1031, %v1177, 0.0
        %1249 = vadd.xlane.f32.xlu0 %v1248
        %v1250 = vpop.xlane.xlu0 %1249
        %v1251 = vsel %vm1031, %v1179, 0.0
        %1252 = vadd.xlane.f32.xlu0 %v1251
        %v1253 = vpop.xlane.xlu0 %1252
        %v1254 = vsel %vm1031, %v1181, 0.0
        %1255 = vadd.xlane.f32.xlu0 %v1254
        %v1256 = vpop.xlane.xlu0 %1255
        %v1257 = vsel %vm1031, %v1183, 0.0
        %1258 = vadd.xlane.f32.xlu0 %v1257
        %v1259 = vpop.xlane.xlu0 %1258
        %v1260 = vsel %vm1031, %v1185, 0.0
        %1261 = vadd.xlane.f32.xlu0 %v1260
        %v1262 = vpop.xlane.xlu0 %1261
        %v1263 = vsel %vm1031, %v1187, 0.0
        %1264 = vadd.xlane.f32.xlu0 %v1263
        %v1265 = vpop.xlane.xlu0 %1264
        %v1266 = vsel %vm1031, %v1189, 0.0
        %1267 = vadd.xlane.f32.xlu0 %v1266
        %v1268 = vpop.xlane.xlu0 %1267
        %v1269 = vsel %vm1031, %v1191, 0.0
        %1270 = vadd.xlane.f32.xlu0 %v1269
        %v1271 = vpop.xlane.xlu0 %1270
        %v1272 = vsel %vm1031, %v1193, 0.0
        %1273 = vadd.xlane.f32.xlu0 %v1272
        %v1274 = vpop.xlane.xlu0 %1273
        %v1275 = vsel %vm1031, %v1195, 0.0
        %1276 = vadd.xlane.f32.xlu0 %v1275
        %v1277 = vpop.xlane.xlu0 %1276
        %v1278 = vsel %vm1031, %v1197, 0.0
        %1279 = vadd.xlane.f32.xlu0 %v1278
        %v1280 = vpop.xlane.xlu0 %1279
        %v1281 = vsel %vm1031, %v1199, 0.0
        %1282 = vadd.xlane.f32.xlu0 %v1281
        %v1283 = vpop.xlane.xlu0 %1282
        %v1284 = vsel %vm1031, %v1201, 0.0
        %1285 = vadd.xlane.f32.xlu0 %v1284
        %v1286 = vpop.xlane.xlu0 %1285
        %v1287 = vsel %vm1031, %v1203, 0.0
        %1288 = vadd.xlane.f32.xlu0 %v1287
        %v1289 = vpop.xlane.xlu0 %1288
        %v1290 = vsel %vm1031, %v1205, 0.0
        %1291 = vadd.xlane.f32.xlu0 %v1290
        %v1292 = vpop.xlane.xlu0 %1291
        %v1293 = vsel %vm1031, %v1207, 0.0
        %1294 = vadd.xlane.f32.xlu0 %v1293
        %v1295 = vpop.xlane.xlu0 %1294
        %v1296 = vsel %vm1031, %v1209, 0.0
        %1297 = vadd.xlane.f32.xlu0 %v1296
        %v1298 = vpop.xlane.xlu0 %1297
        %v1299 = vsel %vm1031, %v1211, 0.0
        %1300 = vadd.xlane.f32.xlu0 %v1299
        %v1301 = vpop.xlane.xlu0 %1300
        %v1302 = vsel %vm1031, %v1213, 0.0
        %1303 = vadd.xlane.f32.xlu0 %v1302
        %v1304 = vpop.xlane.xlu0 %1303
        %v1305 = vsel %vm1031, %v1215, 0.0
        %1306 = vadd.xlane.f32.xlu0 %v1305
        %v1307 = vpop.xlane.xlu0 %1306
        %v1308 = vsel %vm1031, %v1217, 0.0
        %1309 = vadd.xlane.f32.xlu0 %v1308
        %v1310 = vpop.xlane.xlu0 %1309
        %v1311 = vsel %vm1031, %v1219, 0.0
        %1312 = vadd.xlane.f32.xlu0 %v1311
        %v1313 = vpop.xlane.xlu0 %1312
        %v1314 = vsel %vm1031, %v1221, 0.0
        %1315 = vadd.xlane.f32.xlu0 %v1314
        %v1316 = vpop.xlane.xlu0 %1315
        %v1317 = vsel %vm1031, %v1223, 0.0
        %1318 = vadd.xlane.f32.xlu0 %v1317
        %v1319 = vpop.xlane.xlu0 %1318
        %v1320 = vrcp.pop %v1226
        %v1321 = vrcp.pop %v1229
        %v1322 = vrcp.pop %v1232
        %v1323 = vrcp.pop %v1235
        %v1324 = vrcp.pop %v1238
        %v1325 = vrcp.pop %v1241
        %v1326 = vrcp.pop %v1244
        %v1327 = vrcp.pop %v1247
        %v1328 = vrcp.pop %v1250
        %v1329 = vrcp.pop %v1253
        %v1330 = vrcp.pop %v1256
        %v1331 = vrcp.pop %v1259
        %v1332 = vrcp.pop %v1262
        %v1333 = vrcp.pop %v1265
        %v1334 = vrcp.pop %v1268
        %v1335 = vrcp.pop %v1271
        %v1336 = vrcp.pop %v1274
        %v1337 = vrcp.pop %v1277
        %v1338 = vrcp.pop %v1280
        %v1339 = vrcp.pop %v1283
        %v1340 = vrcp.pop %v1286
        %v1341 = vrcp.pop %v1289
        %v1342 = vrcp.pop %v1292
        %v1343 = vrcp.pop %v1295
        %v1344 = vrcp.pop %v1298
        %v1345 = vrcp.pop %v1301
        %v1346 = vrcp.pop %v1304
        %v1347 = vrcp.pop %v1307
        %v1348 = vrcp.pop %v1310
        %v1349 = vrcp.pop %v1313
        %v1350 = vrcp.pop %v1316
        %v1351 = vrcp.pop %v1319
        %v1352 = vmul.f32 %v1161, %v1320
        %v1353 = vmul.f32 %v1163, %v1321
        %v1354 = vmul.f32 %v1165, %v1322
        %v1355 = vmul.f32 %v1167, %v1323
        %v1356 = vmul.f32 %v1169, %v1324
        %v1357 = vmul.f32 %v1171, %v1325
        %v1358 = vmul.f32 %v1173, %v1326
        %v1359 = vmul.f32 %v1175, %v1327
        %v1360 = vmul.f32 %v1177, %v1328
        %v1361 = vmul.f32 %v1179, %v1329
        %v1362 = vmul.f32 %v1181, %v1330
        %v1363 = vmul.f32 %v1183, %v1331
        %v1364 = vmul.f32 %v1185, %v1332
        %v1365 = vmul.f32 %v1187, %v1333
        %v1366 = vmul.f32 %v1189, %v1334
        %v1367 = vmul.f32 %v1191, %v1335
        %v1368 = vmul.f32 %v1193, %v1336
        %v1369 = vmul.f32 %v1195, %v1337
        %v1370 = vmul.f32 %v1197, %v1338
        %v1371 = vmul.f32 %v1199, %v1339
        %v1372 = vmul.f32 %v1201, %v1340
        %v1373 = vmul.f32 %v1203, %v1341
        %v1374 = vmul.f32 %v1205, %v1342
        %v1375 = vmul.f32 %v1207, %v1343
        %v1376 = vmul.f32 %v1209, %v1344
        %v1377 = vmul.f32 %v1211, %v1345
        %v1378 = vmul.f32 %v1213, %v1346
        %v1379 = vmul.f32 %v1215, %v1347
        %v1380 = vmul.f32 %v1217, %v1348
        %v1381 = vmul.f32 %v1219, %v1349
        %v1382 = vmul.f32 %v1221, %v1350
        %v1383 = vmul.f32 %v1223, %v1351
        %v1384 = vpack.c.bf16 %v1353, %v1352
        %v1385 = vpack.c.bf16 %v1355, %v1354
        %v1386 = vpack.c.bf16 %v1357, %v1356
        %v1387 = vpack.c.bf16 %v1359, %v1358
        %v1388 = vpack.c.bf16 %v1361, %v1360
        %v1389 = vpack.c.bf16 %v1363, %v1362
        %v1390 = vpack.c.bf16 %v1365, %v1364
        %v1391 = vpack.c.bf16 %v1367, %v1366
        %v1392 = vpack.c.bf16 %v1369, %v1368
        %v1393 = vpack.c.bf16 %v1371, %v1370
        %v1394 = vpack.c.bf16 %v1373, %v1372
        %v1395 = vpack.c.bf16 %v1375, %v1374
        %v1396 = vpack.c.bf16 %v1377, %v1376
        %v1397 = vpack.c.bf16 %v1379, %v1378
        %v1398 = vpack.c.bf16 %v1381, %v1380
        %v1399 = vpack.c.bf16 %v1383, %v1382
        %1400 = vrot.lane.b32.xlu0 %v435, 96
        %v1401 = vpop.permute.xlu0 %1400
        %1402 = vrot.lane.b32.xlu0 %v436, 96
        %v1403 = vpop.permute.xlu0 %1402
        %v1407 = vsel %vm1031, %v1384, 0
        %v1410 = vsel %vm1031, %v1385, 0
        %1412 = vmatprep.subr.bf16.mxu0 0
        %1413 = vmatpush1.bf16.msra.mxu0 %v1401
        %1414 = vmatprep.subr.bf16.mxu0 0
        %1415 = vmatpush1.bf16.msra.mxu0 %v1403
        %1416 = vmatprep.subr.bf16.mxu0 0
        %1417 = vmatpush1.bf16.msra.mxu0 0
        %1418 = vmatprep.subr.bf16.mxu0 0
        %1419 = vmatpush1.bf16.msra.mxu0 0
        %1420 = vmatprep.subr.bf16.mxu0 0
        %1421 = vmatpush1.bf16.msra.mxu0 0
        %1422 = vmatprep.subr.bf16.mxu0 0
        %1423 = vmatpush1.bf16.msra.mxu0 0
        %1424 = vmatprep.subr.bf16.mxu0 0
        %1425 = vmatpush1.bf16.msra.mxu0 0
        %1426 = vmatprep.subr.bf16.mxu0 0
        %1427 = vmatpush1.bf16.msra.mxu0 0
        %1428 = vmatprep.subr.bf16.mxu0 0
        %1429 = vmatpush1.bf16.msra.mxu0 0
        %1430 = vmatprep.subr.bf16.mxu0 0
        %1431 = vmatpush1.bf16.msra.mxu0 0
        %1432 = vmatprep.subr.bf16.mxu0 0
        %1433 = vmatpush1.bf16.msra.mxu0 0
        %1434 = vmatprep.subr.bf16.mxu0 0
        %1435 = vmatpush1.bf16.msra.mxu0 0
        %1436 = vmatprep.subr.bf16.mxu0 0
        %1437 = vmatpush1.bf16.msra.mxu0 0
        %1438 = vmatprep.subr.bf16.mxu0 0
        %1439 = vmatpush1.bf16.msra.mxu0 0
        %1440 = vmatprep.subr.bf16.mxu0 0
        %1441 = vmatpush1.bf16.msra.mxu0 0
        %1442 = vmatprep.subr.bf16.mxu0 0
        %1443 = vmatpush1.bf16.msra.mxu0 0
        %1444 = vmatprep.mubr.bf16.mxu0 0
        %1445 = vmatmul.mubr.bf16.gmra.mrb[0].mxu0 %v1407
        %v1446 = vpop.f32.mrb[0].mxu0
        %v1447 = vadd.f32 0.0, %v1446
        %v1448 = vpop.f32.mrb[0].mxu0
        %v1449 = vpop.f32.mrb[0].mxu0
        %v1450 = vadd.f32 0.0, %v1449
        %v1451 = vpop.f32.mrb[0].mxu0
        %1452 = vmatprep.mubr.bf16.mxu0 0
        %1453 = vmatmul.mubr.bf16.gmra.mrb[0].mxu0 %v1410
        %v1454 = vpop.f32.mrb[0].mxu0
        %v1455 = vadd.f32 0.0, %v1454
        %v1456 = vpop.f32.mrb[0].mxu0
        %v1457 = vpop.f32.mrb[0].mxu0
        %v1458 = vadd.f32 0.0, %v1457
        %v1459 = vpop.f32.mrb[0].mxu0
        %1460 = vdwg.mxu0
        %1461 = vrot.lane.b32.xlu0 %v437, 96
        %v1462 = vpop.permute.xlu0 %1461
        %1463 = vrot.lane.b32.xlu0 %v438, 96
        %v1464 = vpop.permute.xlu0 %1463
        %v1468 = vsel %vm1031, %v1386, 0
        %v1471 = vsel %vm1031, %v1387, 0
        %1473 = vmatprep.subr.bf16.mxu0 0
        %1474 = vmatpush1.bf16.msra.mxu0 %v1462
        %1475 = vmatprep.subr.bf16.mxu0 0
        %1476 = vmatpush1.bf16.msra.mxu0 %v1464
        %1477 = vmatprep.subr.bf16.mxu0 0
        %1478 = vmatpush1.bf16.msra.mxu0 0
        %1479 = vmatprep.subr.bf16.mxu0 0
        %1480 = vmatpush1.bf16.msra.mxu0 0
        %1481 = vmatprep.subr.bf16.mxu0 0
        %1482 = vmatpush1.bf16.msra.mxu0 0
        %1483 = vmatprep.subr.bf16.mxu0 0
        %1484 = vmatpush1.bf16.msra.mxu0 0
        %1485 = vmatprep.subr.bf16.mxu0 0
        %1486 = vmatpush1.bf16.msra.mxu0 0
        %1487 = vmatprep.subr.bf16.mxu0 0
        %1488 = vmatpush1.bf16.msra.mxu0 0
        %1489 = vmatprep.subr.bf16.mxu0 0
        %1490 = vmatpush1.bf16.msra.mxu0 0
        %1491 = vmatprep.subr.bf16.mxu0 0
        %1492 = vmatpush1.bf16.msra.mxu0 0
        %1493 = vmatprep.subr.bf16.mxu0 0
        %1494 = vmatpush1.bf16.msra.mxu0 0
        %1495 = vmatprep.subr.bf16.mxu0 0
        %1496 = vmatpush1.bf16.msra.mxu0 0
        %1497 = vmatprep.subr.bf16.mxu0 0
        %1498 = vmatpush1.bf16.msra.mxu0 0
        %1499 = vmatprep.subr.bf16.mxu0 0
        %1500 = vmatpush1.bf16.msra.mxu0 0
        %1501 = vmatprep.subr.bf16.mxu0 0
        %1502 = vmatpush1.bf16.msra.mxu0 0
        %1503 = vmatprep.subr.bf16.mxu0 0
        %1504 = vmatpush1.bf16.msra.mxu0 0
        %1505 = vmatprep.mubr.bf16.mxu0 0
        %1506 = vmatmul.mubr.bf16.gmra.mrb[0].mxu0 %v1468
        %v1507 = vpop.f32.mrb[0].mxu0
        %v1508 = vadd.f32 0.0, %v1507
        %v1509 = vpop.f32.mrb[0].mxu0
        %v1510 = vpop.f32.mrb[0].mxu0
        %v1511 = vadd.f32 0.0, %v1510
        %v1512 = vpop.f32.mrb[0].mxu0
        %1513 = vmatprep.mubr.bf16.mxu0 0
        %1514 = vmatmul.mubr.bf16.gmra.mrb[0].mxu0 %v1471
        %v1515 = vpop.f32.mrb[0].mxu0
        %v1516 = vadd.f32 0.0, %v1515
        %v1517 = vpop.f32.mrb[0].mxu0
        %v1518 = vpop.f32.mrb[0].mxu0
        %v1519 = vadd.f32 0.0, %v1518
        %v1520 = vpop.f32.mrb[0].mxu0
        %1521 = vdwg.mxu0
        %1522 = vrot.lane.b32.xlu0 %v439, 96
        %v1523 = vpop.permute.xlu0 %1522
        %1524 = vrot.lane.b32.xlu0 %v440, 96
        %v1525 = vpop.permute.xlu0 %1524
        %v1529 = vsel %vm1031, %v1388, 0
        %v1532 = vsel %vm1031, %v1389, 0
        %1534 = vmatprep.subr.bf16.mxu0 0
        %1535 = vmatpush1.bf16.msra.mxu0 %v1523
        %1536 = vmatprep.subr.bf16.mxu0 0
        %1537 = vmatpush1.bf16.msra.mxu0 %v1525
        %1538 = vmatprep.subr.bf16.mxu0 0
        %1539 = vmatpush1.bf16.msra.mxu0 0
        %1540 = vmatprep.subr.bf16.mxu0 0
        %1541 = vmatpush1.bf16.msra.mxu0 0
        %1542 = vmatprep.subr.bf16.mxu0 0
        %1543 = vmatpush1.bf16.msra.mxu0 0
        %1544 = vmatprep.subr.bf16.mxu0 0
        %1545 = vmatpush1.bf16.msra.mxu0 0
        %1546 = vmatprep.subr.bf16.mxu0 0
        %1547 = vmatpush1.bf16.msra.mxu0 0
        %1548 = vmatprep.subr.bf16.mxu0 0
        %1549 = vmatpush1.bf16.msra.mxu0 0
        %1550 = vmatprep.subr.bf16.mxu0 0
        %1551 = vmatpush1.bf16.msra.mxu0 0
        %1552 = vmatprep.subr.bf16.mxu0 0
        %1553 = vmatpush1.bf16.msra.mxu0 0
        %1554 = vmatprep.subr.bf16.mxu0 0
        %1555 = vmatpush1.bf16.msra.mxu0 0
        %1556 = vmatprep.subr.bf16.mxu0 0
        %1557 = vmatpush1.bf16.msra.mxu0 0
        %1558 = vmatprep.subr.bf16.mxu0 0
        %1559 = vmatpush1.bf16.msra.mxu0 0
        %1560 = vmatprep.subr.bf16.mxu0 0
        %1561 = vmatpush1.bf16.msra.mxu0 0
        %1562 = vmatprep.subr.bf16.mxu0 0
        %1563 = vmatpush1.bf16.msra.mxu0 0
        %1564 = vmatprep.subr.bf16.mxu0 0
        %1565 = vmatpush1.bf16.msra.mxu0 0
        %1566 = vmatprep.mubr.bf16.mxu0 0
        %1567 = vmatmul.mubr.bf16.gmra.mrb[0].mxu0 %v1529
        %v1568 = vpop.f32.mrb[0].mxu0
        %v1569 = vadd.f32 0.0, %v1568
        %v1570 = vpop.f32.mrb[0].mxu0
        %v1571 = vpop.f32.mrb[0].mxu0
        %v1572 = vadd.f32 0.0, %v1571
        %v1573 = vpop.f32.mrb[0].mxu0
        %1574 = vmatprep.mubr.bf16.mxu0 0
        %1575 = vmatmul.mubr.bf16.gmra.mrb[0].mxu0 %v1532
        %v1576 = vpop.f32.mrb[0].mxu0
        %v1577 = vadd.f32 0.0, %v1576
        %v1578 = vpop.f32.mrb[0].mxu0
        %v1579 = vpop.f32.mrb[0].mxu0
        %v1580 = vadd.f32 0.0, %v1579
        %v1581 = vpop.f32.mrb[0].mxu0
        %1582 = vdwg.mxu0
        %1583 = vrot.lane.b32.xlu0 %v441, 96
        %v1584 = vpop.permute.xlu0 %1583
        %1585 = vrot.lane.b32.xlu0 %v442, 96
        %v1586 = vpop.permute.xlu0 %1585
        %v1590 = vsel %vm1031, %v1390, 0
        %v1593 = vsel %vm1031, %v1391, 0
        %1595 = vmatprep.subr.bf16.mxu0 0
        %1596 = vmatpush1.bf16.msra.mxu0 %v1584
        %1597 = vmatprep.subr.bf16.mxu0 0
        %1598 = vmatpush1.bf16.msra.mxu0 %v1586
        %1599 = vmatprep.subr.bf16.mxu0 0
        %1600 = vmatpush1.bf16.msra.mxu0 0
        %1601 = vmatprep.subr.bf16.mxu0 0
        %1602 = vmatpush1.bf16.msra.mxu0 0
        %1603 = vmatprep.subr.bf16.mxu0 0
        %1604 = vmatpush1.bf16.msra.mxu0 0
        %1605 = vmatprep.subr.bf16.mxu0 0
        %1606 = vmatpush1.bf16.msra.mxu0 0
        %1607 = vmatprep.subr.bf16.mxu0 0
        %1608 = vmatpush1.bf16.msra.mxu0 0
        %1609 = vmatprep.subr.bf16.mxu0 0
        %1610 = vmatpush1.bf16.msra.mxu0 0
        %1611 = vmatprep.subr.bf16.mxu0 0
        %1612 = vmatpush1.bf16.msra.mxu0 0
        %1613 = vmatprep.subr.bf16.mxu0 0
        %1614 = vmatpush1.bf16.msra.mxu0 0
        %1615 = vmatprep.subr.bf16.mxu0 0
        %1616 = vmatpush1.bf16.msra.mxu0 0
        %1617 = vmatprep.subr.bf16.mxu0 0
        %1618 = vmatpush1.bf16.msra.mxu0 0
        %1619 = vmatprep.subr.bf16.mxu0 0
        %1620 = vmatpush1.bf16.msra.mxu0 0
        %1621 = vmatprep.subr.bf16.mxu0 0
        %1622 = vmatpush1.bf16.msra.mxu0 0
        %1623 = vmatprep.subr.bf16.mxu0 0
        %1624 = vmatpush1.bf16.msra.mxu0 0
        %1625 = vmatprep.subr.bf16.mxu0 0
        %1626 = vmatpush1.bf16.msra.mxu0 0
        %1627 = vmatprep.mubr.bf16.mxu0 0
        %1628 = vmatmul.mubr.bf16.gmra.mrb[0].mxu0 %v1590
        %v1629 = vpop.f32.mrb[0].mxu0
        %v1630 = vadd.f32 0.0, %v1629
        %v1631 = vpop.f32.mrb[0].mxu0
        %v1632 = vpop.f32.mrb[0].mxu0
        %v1633 = vadd.f32 0.0, %v1632
        %v1634 = vpop.f32.mrb[0].mxu0
        %1635 = vmatprep.mubr.bf16.mxu0 0
        %1636 = vmatmul.mubr.bf16.gmra.mrb[0].mxu0 %v1593
        %v1637 = vpop.f32.mrb[0].mxu0
        %v1638 = vadd.f32 0.0, %v1637
        %v1639 = vpop.f32.mrb[0].mxu0
        %v1640 = vpop.f32.mrb[0].mxu0
        %v1641 = vadd.f32 0.0, %v1640
        %v1642 = vpop.f32.mrb[0].mxu0
        %1643 = vdwg.mxu0
        %1644 = vrot.lane.b32.xlu0 %v443, 96
        %v1645 = vpop.permute.xlu0 %1644
        %1646 = vrot.lane.b32.xlu0 %v444, 96
        %v1647 = vpop.permute.xlu0 %1646
        %v1651 = vsel %vm1031, %v1392, 0
        %v1654 = vsel %vm1031, %v1393, 0
        %1656 = vmatprep.subr.bf16.mxu0 0
        %1657 = vmatpush1.bf16.msra.mxu0 %v1645
        %1658 = vmatprep.subr.bf16.mxu0 0
        %1659 = vmatpush1.bf16.msra.mxu0 %v1647
        %1660 = vmatprep.subr.bf16.mxu0 0
        %1661 = vmatpush1.bf16.msra.mxu0 0
        %1662 = vmatprep.subr.bf16.mxu0 0
        %1663 = vmatpush1.bf16.msra.mxu0 0
        %1664 = vmatprep.subr.bf16.mxu0 0
        %1665 = vmatpush1.bf16.msra.mxu0 0
        %1666 = vmatprep.subr.bf16.mxu0 0
        %1667 = vmatpush1.bf16.msra.mxu0 0
        %1668 = vmatprep.subr.bf16.mxu0 0
        %1669 = vmatpush1.bf16.msra.mxu0 0
        %1670 = vmatprep.subr.bf16.mxu0 0
        %1671 = vmatpush1.bf16.msra.mxu0 0
        %1672 = vmatprep.subr.bf16.mxu0 0
        %1673 = vmatpush1.bf16.msra.mxu0 0
        %1674 = vmatprep.subr.bf16.mxu0 0
        %1675 = vmatpush1.bf16.msra.mxu0 0
        %1676 = vmatprep.subr.bf16.mxu0 0
        %1677 = vmatpush1.bf16.msra.mxu0 0
        %1678 = vmatprep.subr.bf16.mxu0 0
        %1679 = vmatpush1.bf16.msra.mxu0 0
        %1680 = vmatprep.subr.bf16.mxu0 0
        %1681 = vmatpush1.bf16.msra.mxu0 0
        %1682 = vmatprep.subr.bf16.mxu0 0
        %1683 = vmatpush1.bf16.msra.mxu0 0
        %1684 = vmatprep.subr.bf16.mxu0 0
        %1685 = vmatpush1.bf16.msra.mxu0 0
        %1686 = vmatprep.subr.bf16.mxu0 0
        %1687 = vmatpush1.bf16.msra.mxu0 0
        %1688 = vmatprep.mubr.bf16.mxu0 0
        %1689 = vmatmul.mubr.bf16.gmra.mrb[0].mxu0 %v1651
        %v1690 = vpop.f32.mrb[0].mxu0
        %v1691 = vadd.f32 0.0, %v1690
        %v1692 = vpop.f32.mrb[0].mxu0
        %v1693 = vpop.f32.mrb[0].mxu0
        %v1694 = vadd.f32 0.0, %v1693
        %v1695 = vpop.f32.mrb[0].mxu0
        %1696 = vmatprep.mubr.bf16.mxu0 0
        %1697 = vmatmul.mubr.bf16.gmra.mrb[0].mxu0 %v1654
        %v1698 = vpop.f32.mrb[0].mxu0
        %v1699 = vadd.f32 0.0, %v1698
        %v1700 = vpop.f32.mrb[0].mxu0
        %v1701 = vpop.f32.mrb[0].mxu0
        %v1702 = vadd.f32 0.0, %v1701
        %v1703 = vpop.f32.mrb[0].mxu0
        %1704 = vdwg.mxu0
        %1705 = vrot.lane.b32.xlu0 %v445, 96
        %v1706 = vpop.permute.xlu0 %1705
        %1707 = vrot.lane.b32.xlu0 %v446, 96
        %v1708 = vpop.permute.xlu0 %1707
        %v1712 = vsel %vm1031, %v1394, 0
        %v1715 = vsel %vm1031, %v1395, 0
        %1717 = vmatprep.subr.bf16.mxu0 0
        %1718 = vmatpush1.bf16.msra.mxu0 %v1706
        %1719 = vmatprep.subr.bf16.mxu0 0
        %1720 = vmatpush1.bf16.msra.mxu0 %v1708
        %1721 = vmatprep.subr.bf16.mxu0 0
        %1722 = vmatpush1.bf16.msra.mxu0 0
        %1723 = vmatprep.subr.bf16.mxu0 0
        %1724 = vmatpush1.bf16.msra.mxu0 0
        %1725 = vmatprep.subr.bf16.mxu0 0
        %1726 = vmatpush1.bf16.msra.mxu0 0
        %1727 = vmatprep.subr.bf16.mxu0 0
        %1728 = vmatpush1.bf16.msra.mxu0 0
        %1729 = vmatprep.subr.bf16.mxu0 0
        %1730 = vmatpush1.bf16.msra.mxu0 0
        %1731 = vmatprep.subr.bf16.mxu0 0
        %1732 = vmatpush1.bf16.msra.mxu0 0
        %1733 = vmatprep.subr.bf16.mxu0 0
        %1734 = vmatpush1.bf16.msra.mxu0 0
        %1735 = vmatprep.subr.bf16.mxu0 0
        %1736 = vmatpush1.bf16.msra.mxu0 0
        %1737 = vmatprep.subr.bf16.mxu0 0
        %1738 = vmatpush1.bf16.msra.mxu0 0
        %1739 = vmatprep.subr.bf16.mxu0 0
        %1740 = vmatpush1.bf16.msra.mxu0 0
        %1741 = vmatprep.subr.bf16.mxu0 0
        %1742 = vmatpush1.bf16.msra.mxu0 0
        %1743 = vmatprep.subr.bf16.mxu0 0
        %1744 = vmatpush1.bf16.msra.mxu0 0
        %1745 = vmatprep.subr.bf16.mxu0 0
        %1746 = vmatpush1.bf16.msra.mxu0 0
        %1747 = vmatprep.subr.bf16.mxu0 0
        %1748 = vmatpush1.bf16.msra.mxu0 0
        %1749 = vmatprep.mubr.bf16.mxu0 0
        %1750 = vmatmul.mubr.bf16.gmra.mrb[0].mxu0 %v1712
        %v1751 = vpop.f32.mrb[0].mxu0
        %v1752 = vadd.f32 0.0, %v1751
        %v1753 = vpop.f32.mrb[0].mxu0
        %v1754 = vpop.f32.mrb[0].mxu0
        %v1755 = vadd.f32 0.0, %v1754
        %v1756 = vpop.f32.mrb[0].mxu0
        %1757 = vmatprep.mubr.bf16.mxu0 0
        %1758 = vmatmul.mubr.bf16.gmra.mrb[0].mxu0 %v1715
        %v1759 = vpop.f32.mrb[0].mxu0
        %v1760 = vadd.f32 0.0, %v1759
        %v1761 = vpop.f32.mrb[0].mxu0
        %v1762 = vpop.f32.mrb[0].mxu0
        %v1763 = vadd.f32 0.0, %v1762
        %v1764 = vpop.f32.mrb[0].mxu0
        %1765 = vdwg.mxu0
        %1766 = vrot.lane.b32.xlu0 %v447, 96
        %v1767 = vpop.permute.xlu0 %1766
        %1768 = vrot.lane.b32.xlu0 %v448, 96
        %v1769 = vpop.permute.xlu0 %1768
        %v1773 = vsel %vm1031, %v1396, 0
        %v1776 = vsel %vm1031, %v1397, 0
        %1778 = vmatprep.subr.bf16.mxu0 0
        %1779 = vmatpush1.bf16.msra.mxu0 %v1767
        %1780 = vmatprep.subr.bf16.mxu0 0
        %1781 = vmatpush1.bf16.msra.mxu0 %v1769
        %1782 = vmatprep.subr.bf16.mxu0 0
        %1783 = vmatpush1.bf16.msra.mxu0 0
        %1784 = vmatprep.subr.bf16.mxu0 0
        %1785 = vmatpush1.bf16.msra.mxu0 0
        %1786 = vmatprep.subr.bf16.mxu0 0
        %1787 = vmatpush1.bf16.msra.mxu0 0
        %1788 = vmatprep.subr.bf16.mxu0 0
        %1789 = vmatpush1.bf16.msra.mxu0 0
        %1790 = vmatprep.subr.bf16.mxu0 0
        %1791 = vmatpush1.bf16.msra.mxu0 0
        %1792 = vmatprep.subr.bf16.mxu0 0
        %1793 = vmatpush1.bf16.msra.mxu0 0
        %1794 = vmatprep.subr.bf16.mxu0 0
        %1795 = vmatpush1.bf16.msra.mxu0 0
        %1796 = vmatprep.subr.bf16.mxu0 0
        %1797 = vmatpush1.bf16.msra.mxu0 0
        %1798 = vmatprep.subr.bf16.mxu0 0
        %1799 = vmatpush1.bf16.msra.mxu0 0
        %1800 = vmatprep.subr.bf16.mxu0 0
        %1801 = vmatpush1.bf16.msra.mxu0 0
        %1802 = vmatprep.subr.bf16.mxu0 0
        %1803 = vmatpush1.bf16.msra.mxu0 0
        %1804 = vmatprep.subr.bf16.mxu0 0
        %1805 = vmatpush1.bf16.msra.mxu0 0
        %1806 = vmatprep.subr.bf16.mxu0 0
        %1807 = vmatpush1.bf16.msra.mxu0 0
        %1808 = vmatprep.subr.bf16.mxu0 0
        %1809 = vmatpush1.bf16.msra.mxu0 0
        %1810 = vmatprep.mubr.bf16.mxu0 0
        %1811 = vmatmul.mubr.bf16.gmra.mrb[0].mxu0 %v1773
        %v1812 = vpop.f32.mrb[0].mxu0
        %v1813 = vadd.f32 0.0, %v1812
        %v1814 = vpop.f32.mrb[0].mxu0
        %v1815 = vpop.f32.mrb[0].mxu0
        %v1816 = vadd.f32 0.0, %v1815
        %v1817 = vpop.f32.mrb[0].mxu0
        %1818 = vmatprep.mubr.bf16.mxu0 0
        %1819 = vmatmul.mubr.bf16.gmra.mrb[0].mxu0 %v1776
        %v1820 = vpop.f32.mrb[0].mxu0
        %v1821 = vadd.f32 0.0, %v1820
        %v1822 = vpop.f32.mrb[0].mxu0
        %v1823 = vpop.f32.mrb[0].mxu0
        %v1824 = vadd.f32 0.0, %v1823
        %v1825 = vpop.f32.mrb[0].mxu0
        %1826 = vdwg.mxu0
        %1827 = vrot.lane.b32.xlu0 %v449, 96
        %v1828 = vpop.permute.xlu0 %1827
        %1829 = vrot.lane.b32.xlu0 %v450, 96
        %v1830 = vpop.permute.xlu0 %1829
        %v1834 = vsel %vm1031, %v1398, 0
        %v1837 = vsel %vm1031, %v1399, 0
        %1839 = vmatprep.subr.bf16.mxu0 0
        %1840 = vmatpush1.bf16.msra.mxu0 %v1828
        %1841 = vmatprep.subr.bf16.mxu0 0
        %1842 = vmatpush1.bf16.msra.mxu0 %v1830
        %1843 = vmatprep.subr.bf16.mxu0 0
        %1844 = vmatpush1.bf16.msra.mxu0 0
        %1845 = vmatprep.subr.bf16.mxu0 0
        %1846 = vmatpush1.bf16.msra.mxu0 0
        %1847 = vmatprep.subr.bf16.mxu0 0
        %1848 = vmatpush1.bf16.msra.mxu0 0
        %1849 = vmatprep.subr.bf16.mxu0 0
        %1850 = vmatpush1.bf16.msra.mxu0 0
        %1851 = vmatprep.subr.bf16.mxu0 0
        %1852 = vmatpush1.bf16.msra.mxu0 0
        %1853 = vmatprep.subr.bf16.mxu0 0
        %1854 = vmatpush1.bf16.msra.mxu0 0
        %1855 = vmatprep.subr.bf16.mxu0 0
        %1856 = vmatpush1.bf16.msra.mxu0 0
        %1857 = vmatprep.subr.bf16.mxu0 0
        %1858 = vmatpush1.bf16.msra.mxu0 0
        %1859 = vmatprep.subr.bf16.mxu0 0
        %1860 = vmatpush1.bf16.msra.mxu0 0
        %1861 = vmatprep.subr.bf16.mxu0 0
        %1862 = vmatpush1.bf16.msra.mxu0 0
        %1863 = vmatprep.subr.bf16.mxu0 0
        %1864 = vmatpush1.bf16.msra.mxu0 0
        %1865 = vmatprep.subr.bf16.mxu0 0
        %1866 = vmatpush1.bf16.msra.mxu0 0
        %1867 = vmatprep.subr.bf16.mxu0 0
        %1868 = vmatpush1.bf16.msra.mxu0 0
        %1869 = vmatprep.subr.bf16.mxu0 0
        %1870 = vmatpush1.bf16.msra.mxu0 0
        %1871 = vmatprep.mubr.bf16.mxu0 0
        %1872 = vmatmul.mubr.bf16.gmra.mrb[0].mxu0 %v1834
        %v1873 = vpop.f32.mrb[0].mxu0
        %v1874 = vadd.f32 0.0, %v1873
        %v1875 = vpop.f32.mrb[0].mxu0
        %v1876 = vpop.f32.mrb[0].mxu0
        %v1877 = vadd.f32 0.0, %v1876
        %v1878 = vpop.f32.mrb[0].mxu0
        %1879 = vmatprep.mubr.bf16.mxu0 0
        %1880 = vmatmul.mubr.bf16.gmra.mrb[0].mxu0 %v1837
        %v1881 = vpop.f32.mrb[0].mxu0
        %v1882 = vadd.f32 0.0, %v1881
        %v1883 = vpop.f32.mrb[0].mxu0
        %v1884 = vpop.f32.mrb[0].mxu0
        %v1885 = vadd.f32 0.0, %v1884
        %v1886 = vpop.f32.mrb[0].mxu0
        %1887 = vdwg.mxu0
        %v1888 = vcombine.low %v1447, %v1569
        %v1889 = vcombine.high %v1447, %v1569
        %v1891 = vunpack.c.l.s4 1983009808
        %v1892 = vunpack.c.0.s8 %v1891
        %v1893 = vlaneseq
        %v1894 = vshrl.u32 %v1893, 7
        %v1895 = vsub.s32 %v1892, %v1894
        %v1896 = vrot.slane %v1888, %v1895
        %v1898 = vunpack.c.l.s4 1983009808
        %v1899 = vunpack.c.0.s8 %v1898
        %v1900 = vlaneseq
        %v1901 = vshrl.u32 %v1900, 7
        %v1902 = vsub.s32 %v1899, %v1901
        %v1903 = vrot.slane %v1889, %v1902
        %v1904 = vcombine.low %v1508, %v1630
        %v1905 = vcombine.high %v1508, %v1630
        %v1907 = vunpack.c.l.s4 1983009808
        %v1908 = vunpack.c.0.s8 %v1907
        %v1909 = vlaneseq
        %v1910 = vshrl.u32 %v1909, 7
        %v1911 = vsub.s32 %v1908, %v1910
        %v1912 = vrot.slane %v1904, %v1911
        %v1914 = vunpack.c.l.s4 1983009808
        %v1915 = vunpack.c.0.s8 %v1914
        %v1916 = vlaneseq
        %v1917 = vshrl.u32 %v1916, 7
        %v1918 = vsub.s32 %v1915, %v1917
        %v1919 = vrot.slane %v1905, %v1918
        %v1920 = vcombine.low %v1691, %v1813
        %v1921 = vcombine.high %v1691, %v1813
        %v1923 = vunpack.c.l.s4 1983009808
        %v1924 = vunpack.c.0.s8 %v1923
        %v1925 = vlaneseq
        %v1926 = vshrl.u32 %v1925, 7
        %v1927 = vsub.s32 %v1924, %v1926
        %v1928 = vrot.slane %v1920, %v1927
        %v1930 = vunpack.c.l.s4 1983009808
        %v1931 = vunpack.c.0.s8 %v1930
        %v1932 = vlaneseq
        %v1933 = vshrl.u32 %v1932, 7
        %v1934 = vsub.s32 %v1931, %v1933
        %v1935 = vrot.slane %v1921, %v1934
        %v1936 = vcombine.low %v1752, %v1874
        %v1937 = vcombine.high %v1752, %v1874
        %v1939 = vunpack.c.l.s4 1983009808
        %v1940 = vunpack.c.0.s8 %v1939
        %v1941 = vlaneseq
        %v1942 = vshrl.u32 %v1941, 7
        %v1943 = vsub.s32 %v1940, %v1942
        %v1944 = vrot.slane %v1936, %v1943
        %v1946 = vunpack.c.l.s4 1983009808
        %v1947 = vunpack.c.0.s8 %v1946
        %v1948 = vlaneseq
        %v1949 = vshrl.u32 %v1948, 7
        %v1950 = vsub.s32 %v1947, %v1949
        %v1951 = vrot.slane %v1937, %v1950
        %v1952 = vcombine.low %v1896, %v1912
        %v1953 = vcombine.high %v1896, %v1912
        %v1955 = vunpack.c.l.s4 1934713408
        %v1956 = vunpack.c.0.s8 %v1955
        %v1957 = vlaneseq
        %v1958 = vshrl.u32 %v1957, 7
        %v1959 = vsub.s32 %v1956, %v1958
        %v1960 = vrot.slane %v1952, %v1959
        %v1962 = vunpack.c.l.s4 1934713408
        %v1963 = vunpack.c.0.s8 %v1962
        %v1964 = vlaneseq
        %v1965 = vshrl.u32 %v1964, 7
        %v1966 = vsub.s32 %v1963, %v1965
        %v1967 = vrot.slane %v1953, %v1966
        %v1968 = vcombine.low %v1903, %v1919
        %v1969 = vcombine.high %v1903, %v1919
        %v1971 = vunpack.c.l.s4 1934713408
        %v1972 = vunpack.c.0.s8 %v1971
        %v1973 = vlaneseq
        %v1974 = vshrl.u32 %v1973, 7
        %v1975 = vsub.s32 %v1972, %v1974
        %v1976 = vrot.slane %v1968, %v1975
        %v1978 = vunpack.c.l.s4 1934713408
        %v1979 = vunpack.c.0.s8 %v1978
        %v1980 = vlaneseq
        %v1981 = vshrl.u32 %v1980, 7
        %v1982 = vsub.s32 %v1979, %v1981
        %v1983 = vrot.slane %v1969, %v1982
        %v1984 = vcombine.low %v1928, %v1944
        %v1985 = vcombine.high %v1928, %v1944
        %v1987 = vunpack.c.l.s4 1934713408
        %v1988 = vunpack.c.0.s8 %v1987
        %v1989 = vlaneseq
        %v1990 = vshrl.u32 %v1989, 7
        %v1991 = vsub.s32 %v1988, %v1990
        %v1992 = vrot.slane %v1984, %v1991
        %v1994 = vunpack.c.l.s4 1934713408
        %v1995 = vunpack.c.0.s8 %v1994
        %v1996 = vlaneseq
        %v1997 = vshrl.u32 %v1996, 7
        %v1998 = vsub.s32 %v1995, %v1997
        %v1999 = vrot.slane %v1985, %v1998
        %v2000 = vcombine.low %v1935, %v1951
        %v2001 = vcombine.high %v1935, %v1951
        %v2003 = vunpack.c.l.s4 1934713408
        %v2004 = vunpack.c.0.s8 %v2003
        %v2005 = vlaneseq
        %v2006 = vshrl.u32 %v2005, 7
        %v2007 = vsub.s32 %v2004, %v2006
        %v2008 = vrot.slane %v2000, %v2007
        %v2010 = vunpack.c.l.s4 1934713408
        %v2011 = vunpack.c.0.s8 %v2010
        %v2012 = vlaneseq
        %v2013 = vshrl.u32 %v2012, 7
        %v2014 = vsub.s32 %v2011, %v2013
        %v2015 = vrot.slane %v2001, %v2014
        %v2016 = vcombine.low %v1960, %v1992
        %v2017 = vcombine.high %v1960, %v1992
        %v2018 = vcombine.low %v1967, %v1999
        %v2019 = vcombine.high %v1967, %v1999
        %v2020 = vcombine.low %v1976, %v2008
        %v2021 = vcombine.high %v1976, %v2008
        %v2022 = vcombine.low %v1983, %v2015
        %v2023 = vcombine.high %v1983, %v2015
        %v2024 = vcombine.low %v1450, %v1572
        %v2025 = vcombine.high %v1450, %v1572
        %v2027 = vunpack.c.l.s4 1983009808
        %v2028 = vunpack.c.0.s8 %v2027
        %v2029 = vlaneseq
        %v2030 = vshrl.u32 %v2029, 7
        %v2031 = vsub.s32 %v2028, %v2030
        %v2032 = vrot.slane %v2024, %v2031
        %v2034 = vunpack.c.l.s4 1983009808
        %v2035 = vunpack.c.0.s8 %v2034
        %v2036 = vlaneseq
        %v2037 = vshrl.u32 %v2036, 7
        %v2038 = vsub.s32 %v2035, %v2037
        %v2039 = vrot.slane %v2025, %v2038
        %v2040 = vcombine.low %v1511, %v1633
        %v2041 = vcombine.high %v1511, %v1633
        %v2043 = vunpack.c.l.s4 1983009808
        %v2044 = vunpack.c.0.s8 %v2043
        %v2045 = vlaneseq
        %v2046 = vshrl.u32 %v2045, 7
        %v2047 = vsub.s32 %v2044, %v2046
        %v2048 = vrot.slane %v2040, %v2047
        %v2050 = vunpack.c.l.s4 1983009808
        %v2051 = vunpack.c.0.s8 %v2050
        %v2052 = vlaneseq
        %v2053 = vshrl.u32 %v2052, 7
        %v2054 = vsub.s32 %v2051, %v2053
        %v2055 = vrot.slane %v2041, %v2054
        %v2056 = vcombine.low %v1694, %v1816
        %v2057 = vcombine.high %v1694, %v1816
        %v2059 = vunpack.c.l.s4 1983009808
        %v2060 = vunpack.c.0.s8 %v2059
        %v2061 = vlaneseq
        %v2062 = vshrl.u32 %v2061, 7
        %v2063 = vsub.s32 %v2060, %v2062
        %v2064 = vrot.slane %v2056, %v2063
        %v2066 = vunpack.c.l.s4 1983009808
        %v2067 = vunpack.c.0.s8 %v2066
        %v2068 = vlaneseq
        %v2069 = vshrl.u32 %v2068, 7
        %v2070 = vsub.s32 %v2067, %v2069
        %v2071 = vrot.slane %v2057, %v2070
        %v2072 = vcombine.low %v1755, %v1877
        %v2073 = vcombine.high %v1755, %v1877
        %v2075 = vunpack.c.l.s4 1983009808
        %v2076 = vunpack.c.0.s8 %v2075
        %v2077 = vlaneseq
        %v2078 = vshrl.u32 %v2077, 7
        %v2079 = vsub.s32 %v2076, %v2078
        %v2080 = vrot.slane %v2072, %v2079
        %v2082 = vunpack.c.l.s4 1983009808
        %v2083 = vunpack.c.0.s8 %v2082
        %v2084 = vlaneseq
        %v2085 = vshrl.u32 %v2084, 7
        %v2086 = vsub.s32 %v2083, %v2085
        %v2087 = vrot.slane %v2073, %v2086
        %v2088 = vcombine.low %v2032, %v2048
        %v2089 = vcombine.high %v2032, %v2048
        %v2091 = vunpack.c.l.s4 1934713408
        %v2092 = vunpack.c.0.s8 %v2091
        %v2093 = vlaneseq
        %v2094 = vshrl.u32 %v2093, 7
        %v2095 = vsub.s32 %v2092, %v2094
        %v2096 = vrot.slane %v2088, %v2095
        %v2098 = vunpack.c.l.s4 1934713408
        %v2099 = vunpack.c.0.s8 %v2098
        %v2100 = vlaneseq
        %v2101 = vshrl.u32 %v2100, 7
        %v2102 = vsub.s32 %v2099, %v2101
        %v2103 = vrot.slane %v2089, %v2102
        %v2104 = vcombine.low %v2039, %v2055
        %v2105 = vcombine.high %v2039, %v2055
        %v2107 = vunpack.c.l.s4 1934713408
        %v2108 = vunpack.c.0.s8 %v2107
        %v2109 = vlaneseq
        %v2110 = vshrl.u32 %v2109, 7
        %v2111 = vsub.s32 %v2108, %v2110
        %v2112 = vrot.slane %v2104, %v2111
        %v2114 = vunpack.c.l.s4 1934713408
        %v2115 = vunpack.c.0.s8 %v2114
        %v2116 = vlaneseq
        %v2117 = vshrl.u32 %v2116, 7
        %v2118 = vsub.s32 %v2115, %v2117
        %v2119 = vrot.slane %v2105, %v2118
        %v2120 = vcombine.low %v2064, %v2080
        %v2121 = vcombine.high %v2064, %v2080
        %v2123 = vunpack.c.l.s4 1934713408
        %v2124 = vunpack.c.0.s8 %v2123
        %v2125 = vlaneseq
        %v2126 = vshrl.u32 %v2125, 7
        %v2127 = vsub.s32 %v2124, %v2126
        %v2128 = vrot.slane %v2120, %v2127
        %v2130 = vunpack.c.l.s4 1934713408
        %v2131 = vunpack.c.0.s8 %v2130
        %v2132 = vlaneseq
        %v2133 = vshrl.u32 %v2132, 7
        %v2134 = vsub.s32 %v2131, %v2133
        %v2135 = vrot.slane %v2121, %v2134
        %v2136 = vcombine.low %v2071, %v2087
        %v2137 = vcombine.high %v2071, %v2087
        %v2139 = vunpack.c.l.s4 1934713408
        %v2140 = vunpack.c.0.s8 %v2139
        %v2141 = vlaneseq
        %v2142 = vshrl.u32 %v2141, 7
        %v2143 = vsub.s32 %v2140, %v2142
        %v2144 = vrot.slane %v2136, %v2143
        %v2146 = vunpack.c.l.s4 1934713408
        %v2147 = vunpack.c.0.s8 %v2146
        %v2148 = vlaneseq
        %v2149 = vshrl.u32 %v2148, 7
        %v2150 = vsub.s32 %v2147, %v2149
        %v2151 = vrot.slane %v2137, %v2150
        %v2152 = vcombine.low %v2096, %v2128
        %v2153 = vcombine.high %v2096, %v2128
        %v2154 = vcombine.low %v2103, %v2135
        %v2155 = vcombine.high %v2103, %v2135
        %v2156 = vcombine.low %v2112, %v2144
        %v2157 = vcombine.high %v2112, %v2144
        %v2158 = vcombine.low %v2119, %v2151
        %v2159 = vcombine.high %v2119, %v2151
        %v2160 = vcombine.low %v1455, %v1577
        %v2161 = vcombine.high %v1455, %v1577
        %v2163 = vunpack.c.l.s4 1983009808
        %v2164 = vunpack.c.0.s8 %v2163
        %v2165 = vlaneseq
        %v2166 = vshrl.u32 %v2165, 7
        %v2167 = vsub.s32 %v2164, %v2166
        %v2168 = vrot.slane %v2160, %v2167
        %v2170 = vunpack.c.l.s4 1983009808
        %v2171 = vunpack.c.0.s8 %v2170
        %v2172 = vlaneseq
        %v2173 = vshrl.u32 %v2172, 7
        %v2174 = vsub.s32 %v2171, %v2173
        %v2175 = vrot.slane %v2161, %v2174
        %v2176 = vcombine.low %v1516, %v1638
        %v2177 = vcombine.high %v1516, %v1638
        %v2179 = vunpack.c.l.s4 1983009808
        %v2180 = vunpack.c.0.s8 %v2179
        %v2181 = vlaneseq
        %v2182 = vshrl.u32 %v2181, 7
        %v2183 = vsub.s32 %v2180, %v2182
        %v2184 = vrot.slane %v2176, %v2183
        %v2186 = vunpack.c.l.s4 1983009808
        %v2187 = vunpack.c.0.s8 %v2186
        %v2188 = vlaneseq
        %v2189 = vshrl.u32 %v2188, 7
        %v2190 = vsub.s32 %v2187, %v2189
        %v2191 = vrot.slane %v2177, %v2190
        %v2192 = vcombine.low %v1699, %v1821
        %v2193 = vcombine.high %v1699, %v1821
        %v2195 = vunpack.c.l.s4 1983009808
        %v2196 = vunpack.c.0.s8 %v2195
        %v2197 = vlaneseq
        %v2198 = vshrl.u32 %v2197, 7
        %v2199 = vsub.s32 %v2196, %v2198
        %v2200 = vrot.slane %v2192, %v2199
        %v2202 = vunpack.c.l.s4 1983009808
        %v2203 = vunpack.c.0.s8 %v2202
        %v2204 = vlaneseq
        %v2205 = vshrl.u32 %v2204, 7
        %v2206 = vsub.s32 %v2203, %v2205
        %v2207 = vrot.slane %v2193, %v2206
        %v2208 = vcombine.low %v1760, %v1882
        %v2209 = vcombine.high %v1760, %v1882
        %v2211 = vunpack.c.l.s4 1983009808
        %v2212 = vunpack.c.0.s8 %v2211
        %v2213 = vlaneseq
        %v2214 = vshrl.u32 %v2213, 7
        %v2215 = vsub.s32 %v2212, %v2214
        %v2216 = vrot.slane %v2208, %v2215
        %v2218 = vunpack.c.l.s4 1983009808
        %v2219 = vunpack.c.0.s8 %v2218
        %v2220 = vlaneseq
        %v2221 = vshrl.u32 %v2220, 7
        %v2222 = vsub.s32 %v2219, %v2221
        %v2223 = vrot.slane %v2209, %v2222
        %v2224 = vcombine.low %v2168, %v2184
        %v2225 = vcombine.high %v2168, %v2184
        %v2227 = vunpack.c.l.s4 1934713408
        %v2228 = vunpack.c.0.s8 %v2227
        %v2229 = vlaneseq
        %v2230 = vshrl.u32 %v2229, 7
        %v2231 = vsub.s32 %v2228, %v2230
        %v2232 = vrot.slane %v2224, %v2231
        %v2234 = vunpack.c.l.s4 1934713408
        %v2235 = vunpack.c.0.s8 %v2234
        %v2236 = vlaneseq
        %v2237 = vshrl.u32 %v2236, 7
        %v2238 = vsub.s32 %v2235, %v2237
        %v2239 = vrot.slane %v2225, %v2238
        %v2240 = vcombine.low %v2175, %v2191
        %v2241 = vcombine.high %v2175, %v2191
        %v2243 = vunpack.c.l.s4 1934713408
        %v2244 = vunpack.c.0.s8 %v2243
        %v2245 = vlaneseq
        %v2246 = vshrl.u32 %v2245, 7
        %v2247 = vsub.s32 %v2244, %v2246
        %v2248 = vrot.slane %v2240, %v2247
        %v2250 = vunpack.c.l.s4 1934713408
        %v2251 = vunpack.c.0.s8 %v2250
        %v2252 = vlaneseq
        %v2253 = vshrl.u32 %v2252, 7
        %v2254 = vsub.s32 %v2251, %v2253
        %v2255 = vrot.slane %v2241, %v2254
        %v2256 = vcombine.low %v2200, %v2216
        %v2257 = vcombine.high %v2200, %v2216
        %v2259 = vunpack.c.l.s4 1934713408
        %v2260 = vunpack.c.0.s8 %v2259
        %v2261 = vlaneseq
        %v2262 = vshrl.u32 %v2261, 7
        %v2263 = vsub.s32 %v2260, %v2262
        %v2264 = vrot.slane %v2256, %v2263
        %v2266 = vunpack.c.l.s4 1934713408
        %v2267 = vunpack.c.0.s8 %v2266
        %v2268 = vlaneseq
        %v2269 = vshrl.u32 %v2268, 7
        %v2270 = vsub.s32 %v2267, %v2269
        %v2271 = vrot.slane %v2257, %v2270
        %v2272 = vcombine.low %v2207, %v2223
        %v2273 = vcombine.high %v2207, %v2223
        %v2275 = vunpack.c.l.s4 1934713408
        %v2276 = vunpack.c.0.s8 %v2275
        %v2277 = vlaneseq
        %v2278 = vshrl.u32 %v2277, 7
        %v2279 = vsub.s32 %v2276, %v2278
        %v2280 = vrot.slane %v2272, %v2279
        %v2282 = vunpack.c.l.s4 1934713408
        %v2283 = vunpack.c.0.s8 %v2282
        %v2284 = vlaneseq
        %v2285 = vshrl.u32 %v2284, 7
        %v2286 = vsub.s32 %v2283, %v2285
        %v2287 = vrot.slane %v2273, %v2286
        %v2288 = vcombine.low %v2232, %v2264
        %v2289 = vcombine.high %v2232, %v2264
        %v2290 = vcombine.low %v2239, %v2271
        %v2291 = vcombine.high %v2239, %v2271
        %v2292 = vcombine.low %v2248, %v2280
        %v2293 = vcombine.high %v2248, %v2280
        %v2294 = vcombine.low %v2255, %v2287
        %v2295 = vcombine.high %v2255, %v2287
        %v2296 = vcombine.low %v1458, %v1580
        %v2297 = vcombine.high %v1458, %v1580
        %v2299 = vunpack.c.l.s4 1983009808
        %v2300 = vunpack.c.0.s8 %v2299
        %v2301 = vlaneseq
        %v2302 = vshrl.u32 %v2301, 7
        %v2303 = vsub.s32 %v2300, %v2302
        %v2304 = vrot.slane %v2296, %v2303
        %v2306 = vunpack.c.l.s4 1983009808
        %v2307 = vunpack.c.0.s8 %v2306
        %v2308 = vlaneseq
        %v2309 = vshrl.u32 %v2308, 7
        %v2310 = vsub.s32 %v2307, %v2309
        %v2311 = vrot.slane %v2297, %v2310
        %v2312 = vcombine.low %v1519, %v1641
        %v2313 = vcombine.high %v1519, %v1641
        %v2315 = vunpack.c.l.s4 1983009808
        %v2316 = vunpack.c.0.s8 %v2315
        %v2317 = vlaneseq
        %v2318 = vshrl.u32 %v2317, 7
        %v2319 = vsub.s32 %v2316, %v2318
        %v2320 = vrot.slane %v2312, %v2319
        %v2322 = vunpack.c.l.s4 1983009808
        %v2323 = vunpack.c.0.s8 %v2322
        %v2324 = vlaneseq
        %v2325 = vshrl.u32 %v2324, 7
        %v2326 = vsub.s32 %v2323, %v2325
        %v2327 = vrot.slane %v2313, %v2326
        %v2328 = vcombine.low %v1702, %v1824
        %v2329 = vcombine.high %v1702, %v1824
        %v2331 = vunpack.c.l.s4 1983009808
        %v2332 = vunpack.c.0.s8 %v2331
        %v2333 = vlaneseq
        %v2334 = vshrl.u32 %v2333, 7
        %v2335 = vsub.s32 %v2332, %v2334
        %v2336 = vrot.slane %v2328, %v2335
        %v2338 = vunpack.c.l.s4 1983009808
        %v2339 = vunpack.c.0.s8 %v2338
        %v2340 = vlaneseq
        %v2341 = vshrl.u32 %v2340, 7
        %v2342 = vsub.s32 %v2339, %v2341
        %v2343 = vrot.slane %v2329, %v2342
        %v2344 = vcombine.low %v1763, %v1885
        %v2345 = vcombine.high %v1763, %v1885
        %v2347 = vunpack.c.l.s4 1983009808
        %v2348 = vunpack.c.0.s8 %v2347
        %v2349 = vlaneseq
        %v2350 = vshrl.u32 %v2349, 7
        %v2351 = vsub.s32 %v2348, %v2350
        %v2352 = vrot.slane %v2344, %v2351
        %v2354 = vunpack.c.l.s4 1983009808
        %v2355 = vunpack.c.0.s8 %v2354
        %v2356 = vlaneseq
        %v2357 = vshrl.u32 %v2356, 7
        %v2358 = vsub.s32 %v2355, %v2357
        %v2359 = vrot.slane %v2345, %v2358
        %v2360 = vcombine.low %v2304, %v2320
        %v2361 = vcombine.high %v2304, %v2320
        %v2363 = vunpack.c.l.s4 1934713408
        %v2364 = vunpack.c.0.s8 %v2363
        %v2365 = vlaneseq
        %v2366 = vshrl.u32 %v2365, 7
        %v2367 = vsub.s32 %v2364, %v2366
        %v2368 = vrot.slane %v2360, %v2367
        %v2370 = vunpack.c.l.s4 1934713408
        %v2371 = vunpack.c.0.s8 %v2370
        %v2372 = vlaneseq
        %v2373 = vshrl.u32 %v2372, 7
        %v2374 = vsub.s32 %v2371, %v2373
        %v2375 = vrot.slane %v2361, %v2374
        %v2376 = vcombine.low %v2311, %v2327
        %v2377 = vcombine.high %v2311, %v2327
        %v2379 = vunpack.c.l.s4 1934713408
        %v2380 = vunpack.c.0.s8 %v2379
        %v2381 = vlaneseq
        %v2382 = vshrl.u32 %v2381, 7
        %v2383 = vsub.s32 %v2380, %v2382
        %v2384 = vrot.slane %v2376, %v2383
        %v2386 = vunpack.c.l.s4 1934713408
        %v2387 = vunpack.c.0.s8 %v2386
        %v2388 = vlaneseq
        %v2389 = vshrl.u32 %v2388, 7
        %v2390 = vsub.s32 %v2387, %v2389
        %v2391 = vrot.slane %v2377, %v2390
        %v2392 = vcombine.low %v2336, %v2352
        %v2393 = vcombine.high %v2336, %v2352
        %v2395 = vunpack.c.l.s4 1934713408
        %v2396 = vunpack.c.0.s8 %v2395
        %v2397 = vlaneseq
        %v2398 = vshrl.u32 %v2397, 7
        %v2399 = vsub.s32 %v2396, %v2398
        %v2400 = vrot.slane %v2392, %v2399
        %v2402 = vunpack.c.l.s4 1934713408
        %v2403 = vunpack.c.0.s8 %v2402
        %v2404 = vlaneseq
        %v2405 = vshrl.u32 %v2404, 7
        %v2406 = vsub.s32 %v2403, %v2405
        %v2407 = vrot.slane %v2393, %v2406
        %v2408 = vcombine.low %v2343, %v2359
        %v2409 = vcombine.high %v2343, %v2359
        %v2411 = vunpack.c.l.s4 1934713408
        %v2412 = vunpack.c.0.s8 %v2411
        %v2413 = vlaneseq
        %v2414 = vshrl.u32 %v2413, 7
        %v2415 = vsub.s32 %v2412, %v2414
        %v2416 = vrot.slane %v2408, %v2415
        %v2418 = vunpack.c.l.s4 1934713408
        %v2419 = vunpack.c.0.s8 %v2418
        %v2420 = vlaneseq
        %v2421 = vshrl.u32 %v2420, 7
        %v2422 = vsub.s32 %v2419, %v2421
        %v2423 = vrot.slane %v2409, %v2422
        %v2424 = vcombine.low %v2368, %v2400
        %v2425 = vcombine.high %v2368, %v2400
        %v2426 = vcombine.low %v2375, %v2407
        %v2427 = vcombine.high %v2375, %v2407
        %v2428 = vcombine.low %v2384, %v2416
        %v2429 = vcombine.high %v2384, %v2416
        %v2430 = vcombine.low %v2391, %v2423
        %v2431 = vcombine.high %v2391, %v2423
        %2433 = vrot.lane.b32.xlu0 %v2017, 16
        %v2434 = vpop.permute.xlu0 %2433
        %2437 = vrot.lane.b32.xlu0 %v2018, 32
        %v2438 = vpop.permute.xlu0 %2437
        %2441 = vrot.lane.b32.xlu0 %v2019, 48
        %v2442 = vpop.permute.xlu0 %2441
        %2445 = vrot.lane.b32.xlu0 %v2020, 64
        %v2446 = vpop.permute.xlu0 %2445
        %2449 = vrot.lane.b32.xlu0 %v2021, 80
        %v2450 = vpop.permute.xlu0 %2449
        %2453 = vrot.lane.b32.xlu0 %v2022, 96
        %v2454 = vpop.permute.xlu0 %2453
        %2457 = vrot.lane.b32.xlu0 %v2023, 112
        %v2458 = vpop.permute.xlu0 %2457
        %2461 = vrot.lane.b32.xlu0 %v2153, 16
        %v2462 = vpop.permute.xlu0 %2461
        %2465 = vrot.lane.b32.xlu0 %v2154, 32
        %v2466 = vpop.permute.xlu0 %2465
        %2469 = vrot.lane.b32.xlu0 %v2155, 48
        %v2470 = vpop.permute.xlu0 %2469
        %2473 = vrot.lane.b32.xlu0 %v2156, 64
        %v2474 = vpop.permute.xlu0 %2473
        %2477 = vrot.lane.b32.xlu0 %v2157, 80
        %v2478 = vpop.permute.xlu0 %2477
        %2481 = vrot.lane.b32.xlu0 %v2158, 96
        %v2482 = vpop.permute.xlu0 %2481
        %2485 = vrot.lane.b32.xlu0 %v2159, 112
        %v2486 = vpop.permute.xlu0 %2485
        %2489 = vrot.lane.b32.xlu0 %v2289, 16
        %v2490 = vpop.permute.xlu0 %2489
        %2493 = vrot.lane.b32.xlu0 %v2290, 32
        %v2494 = vpop.permute.xlu0 %2493
        %2497 = vrot.lane.b32.xlu0 %v2291, 48
        %v2498 = vpop.permute.xlu0 %2497
        %2501 = vrot.lane.b32.xlu0 %v2292, 64
        %v2502 = vpop.permute.xlu0 %2501
        %2505 = vrot.lane.b32.xlu0 %v2293, 80
        %v2506 = vpop.permute.xlu0 %2505
        %2509 = vrot.lane.b32.xlu0 %v2294, 96
        %v2510 = vpop.permute.xlu0 %2509
        %2513 = vrot.lane.b32.xlu0 %v2295, 112
        %v2514 = vpop.permute.xlu0 %2513
        %2517 = vrot.lane.b32.xlu0 %v2425, 16
        %v2518 = vpop.permute.xlu0 %2517
        %2521 = vrot.lane.b32.xlu0 %v2426, 32
        %v2522 = vpop.permute.xlu0 %2521
        %2525 = vrot.lane.b32.xlu0 %v2427, 48
        %v2526 = vpop.permute.xlu0 %2525
        %2529 = vrot.lane.b32.xlu0 %v2428, 64
        %v2530 = vpop.permute.xlu0 %2529
        %2533 = vrot.lane.b32.xlu0 %v2429, 80
        %v2534 = vpop.permute.xlu0 %2533
        %2537 = vrot.lane.b32.xlu0 %v2430, 96
        %v2538 = vpop.permute.xlu0 %2537
        %2541 = vrot.lane.b32.xlu0 %v2431, 112
        %v2542 = vpop.permute.xlu0 %2541
        %v2544 = vsel %vm457, %v2016, %v2434
        %v2545 = vsel %vm1031, %v2544, %v2438
        %vm2546 = vcmask 392192
        %v2547 = vsel %vm2546, %v2545, %v2442
        %v2548 = vsel %vm225, %v2547, %v2446
        %vm2549 = vcmask 654336
        %v2550 = vsel %vm2549, %v2548, %v2450
        %vm2551 = vcmask 785408
        %v2552 = vsel %vm2551, %v2550, %v2454
        %vm2553 = vcmask 916480
        %v2554 = vsel %vm2553, %v2552, %v2458
        %v2555 = vsel %vm457, %v2152, %v2462
        %v2556 = vsel %vm1031, %v2555, %v2466
        %v2557 = vsel %vm2546, %v2556, %v2470
        %v2558 = vsel %vm225, %v2557, %v2474
        %v2559 = vsel %vm2549, %v2558, %v2478
        %v2560 = vsel %vm2551, %v2559, %v2482
        %v2561 = vsel %vm2553, %v2560, %v2486
        %v2562 = vsel %vm457, %v2288, %v2490
        %v2563 = vsel %vm1031, %v2562, %v2494
        %v2564 = vsel %vm2546, %v2563, %v2498
        %v2565 = vsel %vm225, %v2564, %v2502
        %v2566 = vsel %vm2549, %v2565, %v2506
        %v2567 = vsel %vm2551, %v2566, %v2510
        %v2568 = vsel %vm2553, %v2567, %v2514
        %v2569 = vsel %vm457, %v2424, %v2518
        %v2570 = vsel %vm1031, %v2569, %v2522
        %v2571 = vsel %vm2546, %v2570, %v2526
        %v2572 = vsel %vm225, %v2571, %v2530
        %v2573 = vsel %vm2549, %v2572, %v2534
        %v2574 = vsel %vm2551, %v2573, %v2538
        %v2575 = vsel %vm2553, %v2574, %v2542
        %2576 = vst [vmem:[%s137] sm:$0xff] %v2554
        %2577 = vst [vmem:[%s137 + $0x8] sm:$0xff] %v2561
        %2578 = vst [vmem:[%s137 + $0x10] sm:$0xff] %v2568
        %2579 = vst [vmem:[%s137 + $0x18] sm:$0xff] %v2575
        %s2580 = sand.u32 %s71, 1
        %s2581 = scalar_lea.sflag [#allocation3], %s2580
        %s2582 = sand.u32 %s71, 1
        %s2583 = smul.addr %s2582, 32
        %s2584 = scalar_lea.vmem [#allocation2], %s2583
        // Predicated region
        $region29: #{tpu_custom_call.1} parent=27 // pred_check
          %p2585 = pneg %p81
        $region30: #{tpu_custom_call.1} parent=27 // pred_check_branch
          %2587 = sbr.rel (%p2585) target = $region32
        $region31: #{tpu_custom_call.1} parent=27 // pred_region
          %s2589 = ssub.s32 512, 512
          %2590 = vsyncadd %s2581, %s2589
          %s2591 = smul.addr %s16, 4
          %s2592 = smul.addr %s2591, 128
          %s2593 = scalar_lea.hbm %s2, %s2592
          %s2595 = sshll.u32 %s2584, 4
          %s2596 = int_to_ptr.vmem [resolvable:$true] %s2595
          %2598 = dma.vmem_to_hbm [thread:$0]  %s2596, 512, %s2593, %s2581
        $region32: #{tpu_custom_call.1} parent=27 // pred_fallthru
          _
      $region28: #{tpu_custom_call.1} parent=5 // pred_fallthru
        _
      %p2599 = scmp.le.s32.totalorder 2, %s11
      // Predicated region
      $region33: #{tpu_custom_call.1} parent=5 // pred_check
        %p2600 = pneg %p2599
      $region34: #{tpu_custom_call.1} parent=5 // pred_check_branch
        %2602 = sbr.rel (%p2600) target = $region36
      $region35: #{tpu_custom_call.1} parent=5 // pred_region
        %s2603 = ssub.s32 %s11, 2
        // Predicated region
        $region37: #{tpu_custom_call.1} parent=35 // pred_check
          %p2604 = pneg %p87
        $region38: #{tpu_custom_call.1} parent=35 // pred_check_branch
          %2606 = sbr.rel (%p2604) target = $region40
        $region39: #{tpu_custom_call.1} parent=35 // pred_region
          %s2607 = sand.u32 %s72, 1
          %s2608 = scalar_lea.sflag [#allocation3], %s2607
          %s2609 = sand.u32 %s72, 1
          %s2610 = smul.addr %s2609, 32
          %s2611 = scalar_lea.vmem [#allocation2], %s2610
          %2612 = dma.done %s2608, 512
        $region40: #{tpu_custom_call.1} parent=35 // pred_fallthru
          _
      $region36: #{tpu_custom_call.1} parent=5 // pred_fallthru
        _
    $region6: #{tpu_custom_call.1} parent=1 // loop_footer
      %s15 = sadd.s32 1, %s11
    $region7: #{tpu_custom_call.1} parent=1 // loop_footer_branch
      %10 = sbr.rel target = $region3
    $region8: #{tpu_custom_call.1} parent=1 // loop_exit
      _
    %2613 = vsyncpa [#allocation3], 1
    %s2614 = scalar_lea.sflag [#allocation3], 1
    %2615 = vsyncpa %s2614, 1

</llo_original>
